<compile_context>
chip_gen: v6e
topology: v6e:2x2x1
jax: 0.10.0
libtpu: 0.0.40
codegen_flags: <defaults>
</compile_context>

<pallas_src>
import jax
import jax.numpy as jnp
from jax.experimental import pallas as pl
from jax.experimental.pallas import tpu as pltpu

KSIZE = 3      # depthwise conv kernel size
_PADW = 8      # left/right padding (in W) of the scratch slab; 8 keeps the
               # interior store and the side-strip zeroing sublane-aligned (f32).


def _gelu_tanh(x):
    # TODO(synk): PyTorch nn.GELU() defaults to the exact erf form; Mosaic has no
    # guaranteed erf lowering, so we use the tanh approximation here.
    c0 = 0.7978845608028654  # sqrt(2/pi)
    return 0.5 * x * (1.0 + jnp.tanh(c0 * (x + 0.044715 * x * x * x)))


def _residual_block_kernel(x_ref, p_ref, o_ref, xpad_ref):
    """One (n, channel-block) grid step: conv3x3(dw) + GELU + BN + residual.

    x_ref:    VMEM (1, H, W, Cb)          NHWC activation block (lanes = channels)
    p_ref:    VMEM (12, Cb)               rows 0..8 = conv taps (row di*3+dj),
                                          row 9 = conv bias, 10/11 = BN scale/shift
    o_ref:    VMEM (1, H, W, Cb)          output block
    xpad_ref: VMEM (H+2, W+2*_PADW, Cb)   scratch used for in-kernel SAME pad
    """
    H, W = x_ref.shape[1], x_ref.shape[2]
    Wp = W + 2 * _PADW

    p = p_ref[...].astype(jnp.float32)      # (12, Cb) per-channel lane vectors

    # --- in-kernel SAME padding: zero only the halo that the taps read -------
    zrow = jnp.zeros((Wp, xpad_ref.shape[-1]), dtype=xpad_ref.dtype)
    xpad_ref[0] = zrow                                   # top halo row
    xpad_ref[H + 1] = zrow                               # bottom halo row
    zcol = jnp.zeros((H, _PADW, xpad_ref.shape[-1]), dtype=xpad_ref.dtype)
    xpad_ref[1:1 + H, 0:_PADW, :] = zcol                 # left strip (aligned, 8 wide)
    xpad_ref[1:1 + H, Wp - _PADW:Wp, :] = zcol           # right strip (aligned, 8 wide)
    # interior: store x at (row 1, col _PADW) -> sublane-aligned store
    xpad_ref[1:1 + H, _PADW:_PADW + W, :] = x_ref[0]

    # --- depthwise 3x3 conv: 3 aligned band loads, in-register dj shifts ------
    # acc initialized with the conv bias folded into the first tap (no zeros
    # pass, no separate +bias pass).
    acc = None
    for di in range(KSIZE):
        band = xpad_ref[di:di + H]                       # (H, Wp, Cb) aligned load
        for dj in range(KSIZE):
            wk = p[di * KSIZE + dj]                      # (Cb,) lane vector
            win = band[:, _PADW - 1 + dj:_PADW - 1 + dj + W, :]
            term = wk * win
            acc = (p[9] + term) if acc is None else (acc + term)

    g = _gelu_tanh(acc)                                  # GELU
    y = g * p[10] + p[11]                                # folded BatchNorm (inference)

    # Re-read the residual from the slab interior right before the add so the
    # input doesn't stay live across the whole conv/GELU/BN chain.
    x_res = xpad_ref[1:1 + H, _PADW:_PADW + W, :]
    o_ref[0] = (y + x_res).astype(o_ref.dtype)


def _choose_c_block(C, N, H, W, itemsize, target_bytes=2 * 1024 * 1024):
    """Pick a channel block: multiple of 128 dividing C, (H, W, Cb) block sized
    ~<= target_bytes, and keep at least 2 grid steps so both v7x TCs get work."""
    divisors = [cb for cb in range(128, C + 1, 128) if C % cb == 0]
    if not divisors:                       # C < 128 (already padded away normally)
        return C
    fitting = [cb for cb in divisors if H * W * cb * itemsize <= target_bytes]
    cb = max(fitting) if fitting else divisors[0]
    if N * (C // cb) < 2:                  # grid would collapse to a single step
        smaller = [d for d in divisors if d < cb]
        if smaller:
            cb = max(smaller)
    return cb


def residual_convmixer_block_nhwc(x, w, b, gamma, beta, mean, var, eps=1e-5):
    """x: (N, H, W, C). w: (C, 1, 3, 3) depthwise weights (PyTorch layout)."""
    N, H, W, C = x.shape

    # Fold BN running stats + affine into a per-channel scale/shift (inference).
    scale = gamma / jnp.sqrt(var + eps)
    shift = beta - mean * scale
    params = jnp.concatenate(
        [
            w.reshape(C, KSIZE * KSIZE).T.astype(jnp.float32),  # (9, C) conv taps
            b[None, :].astype(jnp.float32),                     # (1, C) conv bias
            scale[None, :].astype(jnp.float32),                 # (1, C) BN scale
            shift[None, :].astype(jnp.float32),                 # (1, C) BN shift
        ],
        axis=0,
    )                                                           # (12, C)

    # Pad channels to a multiple of 128 so the lane (last) dim is always dense.
    # Padded channels have zero taps/bias/scale/shift and zero input -> zero out.
    C_pad = ((C + 127) // 128) * 128
    if C_pad != C:
        x_k = jnp.pad(x, ((0, 0), (0, 0), (0, 0), (0, C_pad - C)))
        params = jnp.pad(params, ((0, 0), (0, C_pad - C)))
    else:
        x_k = x

    itemsize = jnp.dtype(x.dtype).itemsize
    cb = _choose_c_block(C_pad, N, H, W, itemsize)
    grid = (N, C_pad // cb)

    # VMEM budget: double-buffered in + out blocks, padded slab, params, plus
    # headroom for the compiler's full-tile f32 temporaries. Capped well under
    # v7x's 64 MiB physical VMEM.
    block_bytes = H * W * cb * itemsize
    slab_bytes = (H + 2) * (W + 2 * _PADW) * cb * itemsize
    temps_bytes = 8 * H * W * cb * 4
    need = 4 * block_bytes + slab_bytes + 2 * 12 * cb * 4 + temps_bytes + (1 << 20)
    vmem_limit = int(min(max(need, 16 << 20), 48 << 20))

    out = pl.pallas_call(
        _residual_block_kernel,
        out_shape=jax.ShapeDtypeStruct((N, H, W, C_pad), x.dtype),
        grid_spec=pltpu.PrefetchScalarGridSpec(
            num_scalar_prefetch=0,
            grid=grid,
            in_specs=[
                pl.BlockSpec((1, H, W, cb), lambda n, c: (n, 0, 0, c)),  # activations
                pl.BlockSpec((12, cb), lambda n, c: (0, c)),             # params
            ],
            out_specs=pl.BlockSpec((1, H, W, cb), lambda n, c: (n, 0, 0, c)),
            scratch_shapes=[
                pltpu.VMEM((H + 2, W + 2 * _PADW, cb), x.dtype),         # padded slab
            ],
        ),
        compiler_params=pltpu.CompilerParams(
            dimension_semantics=("parallel", "parallel"),
            vmem_limit_bytes=vmem_limit,
        ),
    )(x_k, params)

    if C_pad != C:
        out = out[..., :C]
    return out


def residual_convmixer_block(x, w, b, gamma, beta, mean, var, eps=1e-5):
    """NCHW interface matching the PyTorch module.

    The NCHW<->NHWC transposes are layout plumbing for the PyTorch interface;
    in a full ConvMixer you would keep activations channel-last end-to-end.
    """
    x_nhwc = jnp.transpose(x, (0, 2, 3, 1))
    y_nhwc = residual_convmixer_block_nhwc(x_nhwc, w, b, gamma, beta, mean, var, eps)
    return jnp.transpose(y_nhwc, (0, 3, 1, 2))


def residual_reference(x, w, b, gamma, beta, mean, var, eps=1e-5):
    """Pure-JAX NCHW reference: fn(x) + x with the same fn."""
    N, C, H, W = x.shape
    y = jax.lax.conv_general_dilated(
        x, w, window_strides=(1, 1), padding="SAME",
        feature_group_count=C,
        dimension_numbers=("NCHW", "OIHW", "NCHW"),
        precision=jax.lax.Precision.HIGHEST)
    y = y + b[None, :, None, None]
    y = _gelu_tanh(y)
    scale = gamma / jnp.sqrt(var + eps)
    shift = beta - mean * scale
    y = y * scale[None, :, None, None] + shift[None, :, None, None]
    return y + x


if __name__ == "__main__":
    N, C, H, W = 2, 4, 16, 16

    key = jax.random.PRNGKey(0)
    kx, kw, kb, kg, kbe = jax.random.split(key, 5)

    x = jax.random.normal(kx, (N, C, H, W), dtype=jnp.float32)
    w = jax.random.normal(kw, (C, 1, KSIZE, KSIZE), dtype=jnp.float32) * 0.2
    b = jax.random.normal(kb, (C,), dtype=jnp.float32) * 0.1
    gamma = 1.0 + 0.1 * jax.random.normal(kg, (C,), dtype=jnp.float32)
    beta = 0.1 * jax.random.normal(kbe, (C,), dtype=jnp.float32)
    running_mean = jnp.zeros((C,), jnp.float32)
    running_var = jnp.ones((C,), jnp.float32)

    out = residual_convmixer_block(x, w, b, gamma, beta, running_mean, running_var)
    out = jax.block_until_ready(out)

    ref = residual_reference(x, w, b, gamma, beta, running_mean, running_var)
    assert out.shape == (N, C, H, W)
    assert jnp.allclose(out, ref, atol=1e-3, rtol=1e-3), "mismatch vs JAX reference"

    print("KERNEL_OK")
</pallas_src>

<mosaic_0001>
module attributes {stable_mosaic.version = 11 : i64} {
  func.func @_residual_block_kernel(%arg0: i32, %arg1: i32, %arg2: memref<1x16x16x128xf32, #tpu.memory_space<vmem>>, %arg3: memref<12x128xf32, #tpu.memory_space<vmem>>, %arg4: memref<1x16x16x128xf32, #tpu.memory_space<vmem>>, %arg5: memref<18x32x128xf32, #tpu.memory_space<vmem>>) attributes {dimension_semantics = [#tpu.dimension_semantics<parallel>, #tpu.dimension_semantics<parallel>], iteration_bounds = array<i64: 2, 1>, scalar_prefetch = 0 : i64, scratch_operands = 1 : i64, tpu.core_type = #tpu.core_type<tc>, window_params = [{transform_indices = @transform_0, window_bounds = array<i64: 1, 16, 16, 128>}, {transform_indices = @transform_1, window_bounds = array<i64: 12, 128>}, {transform_indices = @transform_2, window_bounds = array<i64: 1, 16, 16, 128>}]} {
    %c0 = arith.constant 0 : index
    %c0_0 = arith.constant 0 : index
    %0 = vector.load %arg3[%c0, %c0_0] : memref<12x128xf32, #tpu.memory_space<vmem>>, vector<12x128xf32>
    %cst = arith.constant 0.000000e+00 : f32
    %1 = vector.broadcast %cst : f32 to vector<32x128xf32>
    %c0_1 = arith.constant 0 : index
    %c0_2 = arith.constant 0 : index
    %c0_3 = arith.constant 0 : index
    %2 = vector.load %arg5[%c0_1, %c0_2, %c0_3] : memref<18x32x128xf32, #tpu.memory_space<vmem>>, vector<1x32x128xf32>
    %3 = vector.shape_cast %2 : vector<1x32x128xf32> to vector<32x128xf32>
    %4 = vector.shape_cast %1 : vector<32x128xf32> to vector<1x32x128xf32>
    tpu.vector_store %arg5[%c0_1, %c0_2, %c0_3], %4 {strides = array<i32>} : memref<18x32x128xf32, #tpu.memory_space<vmem>>, vector<1x32x128xf32>,
    %c17 = arith.constant 17 : index
    %c0_4 = arith.constant 0 : index
    %c0_5 = arith.constant 0 : index
    %5 = vector.load %arg5[%c17, %c0_4, %c0_5] : memref<18x32x128xf32, #tpu.memory_space<vmem>>, vector<1x32x128xf32>
    %6 = vector.shape_cast %5 : vector<1x32x128xf32> to vector<32x128xf32>
    %7 = vector.shape_cast %1 : vector<32x128xf32> to vector<1x32x128xf32>
    tpu.vector_store %arg5[%c17, %c0_4, %c0_5], %7 {strides = array<i32>} : memref<18x32x128xf32, #tpu.memory_space<vmem>>, vector<1x32x128xf32>,
    %cst_6 = arith.constant 0.000000e+00 : f32
    %8 = vector.broadcast %cst_6 : f32 to vector<16x8x128xf32>
    %c1 = arith.constant 1 : index
    %c0_7 = arith.constant 0 : index
    %c0_8 = arith.constant 0 : index
    %9 = vector.load %arg5[%c1, %c0_7, %c0_8] : memref<18x32x128xf32, #tpu.memory_space<vmem>>, vector<16x8x128xf32>
    tpu.vector_store %arg5[%c1, %c0_7, %c0_8], %8 {strides = array<i32>} : memref<18x32x128xf32, #tpu.memory_space<vmem>>, vector<16x8x128xf32>,
    %c1_9 = arith.constant 1 : index
    %c24 = arith.constant 24 : index
    %c0_10 = arith.constant 0 : index
    %10 = vector.load %arg5[%c1_9, %c24, %c0_10] : memref<18x32x128xf32, #tpu.memory_space<vmem>>, vector<16x8x128xf32>
    tpu.vector_store %arg5[%c1_9, %c24, %c0_10], %8 {strides = array<i32>} : memref<18x32x128xf32, #tpu.memory_space<vmem>>, vector<16x8x128xf32>,
    %c0_11 = arith.constant 0 : index
    %c0_12 = arith.constant 0 : index
    %c0_13 = arith.constant 0 : index
    %c0_14 = arith.constant 0 : index
    %11 = vector.load %arg2[%c0_11, %c0_12, %c0_13, %c0_14] : memref<1x16x16x128xf32, #tpu.memory_space<vmem>>, vector<1x16x16x128xf32>
    %12 = vector.shape_cast %11 : vector<1x16x16x128xf32> to vector<16x16x128xf32>
    %c1_15 = arith.constant 1 : index
    %c8 = arith.constant 8 : index
    %c0_16 = arith.constant 0 : index
    %13 = vector.load %arg5[%c1_15, %c8, %c0_16] : memref<18x32x128xf32, #tpu.memory_space<vmem>>, vector<16x16x128xf32>
    tpu.vector_store %arg5[%c1_15, %c8, %c0_16], %12 {strides = array<i32>} : memref<18x32x128xf32, #tpu.memory_space<vmem>>, vector<16x16x128xf32>,
    %c0_17 = arith.constant 0 : index
    %c0_18 = arith.constant 0 : index
    %c0_19 = arith.constant 0 : index
    %14 = vector.load %arg5[%c0_17, %c0_18, %c0_19] : memref<18x32x128xf32, #tpu.memory_space<vmem>>, vector<16x32x128xf32>
    %15 = vector.extract_strided_slice %0 {offsets = [0, 0], sizes = [1, 128], strides = [1, 1]} : vector<12x128xf32> to vector<1x128xf32>
    %16 = vector.shape_cast %15 : vector<1x128xf32> to vector<128xf32>
    %17 = vector.extract_strided_slice %14 {offsets = [0, 7, 0], sizes = [16, 16, 128], strides = [1, 1, 1]} : vector<16x32x128xf32> to vector<16x16x128xf32>
    %18 = vector.shape_cast %16 : vector<128xf32> to vector<1x1x128xf32>
    %19 = vector.broadcast %18 : vector<1x1x128xf32> to vector<16x16x128xf32>
    %20 = arith.mulf %19, %17 : vector<16x16x128xf32>
    %21 = vector.extract_strided_slice %0 {offsets = [9, 0], sizes = [1, 128], strides = [1, 1]} : vector<12x128xf32> to vector<1x128xf32>
    %22 = vector.shape_cast %21 : vector<1x128xf32> to vector<128xf32>
    %23 = vector.shape_cast %22 : vector<128xf32> to vector<1x1x128xf32>
    %24 = vector.broadcast %23 : vector<1x1x128xf32> to vector<16x16x128xf32>
    %25 = arith.addf %24, %20 : vector<16x16x128xf32>
    %26 = vector.extract_strided_slice %0 {offsets = [1, 0], sizes = [1, 128], strides = [1, 1]} : vector<12x128xf32> to vector<1x128xf32>
    %27 = vector.shape_cast %26 : vector<1x128xf32> to vector<128xf32>
    %28 = vector.extract_strided_slice %14 {offsets = [0, 8, 0], sizes = [16, 16, 128], strides = [1, 1, 1]} : vector<16x32x128xf32> to vector<16x16x128xf32>
    %29 = vector.shape_cast %27 : vector<128xf32> to vector<1x1x128xf32>
    %30 = vector.broadcast %29 : vector<1x1x128xf32> to vector<16x16x128xf32>
    %31 = arith.mulf %30, %28 : vector<16x16x128xf32>
    %32 = arith.addf %25, %31 : vector<16x16x128xf32>
    %33 = vector.extract_strided_slice %0 {offsets = [2, 0], sizes = [1, 128], strides = [1, 1]} : vector<12x128xf32> to vector<1x128xf32>
    %34 = vector.shape_cast %33 : vector<1x128xf32> to vector<128xf32>
    %35 = vector.extract_strided_slice %14 {offsets = [0, 9, 0], sizes = [16, 16, 128], strides = [1, 1, 1]} : vector<16x32x128xf32> to vector<16x16x128xf32>
    %36 = vector.shape_cast %34 : vector<128xf32> to vector<1x1x128xf32>
    %37 = vector.broadcast %36 : vector<1x1x128xf32> to vector<16x16x128xf32>
    %38 = arith.mulf %37, %35 : vector<16x16x128xf32>
    %39 = arith.addf %32, %38 : vector<16x16x128xf32>
    %c1_20 = arith.constant 1 : index
    %c0_21 = arith.constant 0 : index
    %c0_22 = arith.constant 0 : index
    %40 = vector.load %arg5[%c1_20, %c0_21, %c0_22] : memref<18x32x128xf32, #tpu.memory_space<vmem>>, vector<16x32x128xf32>
    %41 = vector.extract_strided_slice %0 {offsets = [3, 0], sizes = [1, 128], strides = [1, 1]} : vector<12x128xf32> to vector<1x128xf32>
    %42 = vector.shape_cast %41 : vector<1x128xf32> to vector<128xf32>
    %43 = vector.extract_strided_slice %40 {offsets = [0, 7, 0], sizes = [16, 16, 128], strides = [1, 1, 1]} : vector<16x32x128xf32> to vector<16x16x128xf32>
    %44 = vector.shape_cast %42 : vector<128xf32> to vector<1x1x128xf32>
    %45 = vector.broadcast %44 : vector<1x1x128xf32> to vector<16x16x128xf32>
    %46 = arith.mulf %45, %43 : vector<16x16x128xf32>
    %47 = arith.addf %39, %46 : vector<16x16x128xf32>
    %48 = vector.extract_strided_slice %0 {offsets = [4, 0], sizes = [1, 128], strides = [1, 1]} : vector<12x128xf32> to vector<1x128xf32>
    %49 = vector.shape_cast %48 : vector<1x128xf32> to vector<128xf32>
    %50 = vector.extract_strided_slice %40 {offsets = [0, 8, 0], sizes = [16, 16, 128], strides = [1, 1, 1]} : vector<16x32x128xf32> to vector<16x16x128xf32>
    %51 = vector.shape_cast %49 : vector<128xf32> to vector<1x1x128xf32>
    %52 = vector.broadcast %51 : vector<1x1x128xf32> to vector<16x16x128xf32>
    %53 = arith.mulf %52, %50 : vector<16x16x128xf32>
    %54 = arith.addf %47, %53 : vector<16x16x128xf32>
    %55 = vector.extract_strided_slice %0 {offsets = [5, 0], sizes = [1, 128], strides = [1, 1]} : vector<12x128xf32> to vector<1x128xf32>
    %56 = vector.shape_cast %55 : vector<1x128xf32> to vector<128xf32>
    %57 = vector.extract_strided_slice %40 {offsets = [0, 9, 0], sizes = [16, 16, 128], strides = [1, 1, 1]} : vector<16x32x128xf32> to vector<16x16x128xf32>
    %58 = vector.shape_cast %56 : vector<128xf32> to vector<1x1x128xf32>
    %59 = vector.broadcast %58 : vector<1x1x128xf32> to vector<16x16x128xf32>
    %60 = arith.mulf %59, %57 : vector<16x16x128xf32>
    %61 = arith.addf %54, %60 : vector<16x16x128xf32>
    %c2 = arith.constant 2 : index
    %c0_23 = arith.constant 0 : index
    %c0_24 = arith.constant 0 : index
    %62 = vector.load %arg5[%c2, %c0_23, %c0_24] : memref<18x32x128xf32, #tpu.memory_space<vmem>>, vector<16x32x128xf32>
    %63 = vector.extract_strided_slice %0 {offsets = [6, 0], sizes = [1, 128], strides = [1, 1]} : vector<12x128xf32> to vector<1x128xf32>
    %64 = vector.shape_cast %63 : vector<1x128xf32> to vector<128xf32>
    %65 = vector.extract_strided_slice %62 {offsets = [0, 7, 0], sizes = [16, 16, 128], strides = [1, 1, 1]} : vector<16x32x128xf32> to vector<16x16x128xf32>
    %66 = vector.shape_cast %64 : vector<128xf32> to vector<1x1x128xf32>
    %67 = vector.broadcast %66 : vector<1x1x128xf32> to vector<16x16x128xf32>
    %68 = arith.mulf %67, %65 : vector<16x16x128xf32>
    %69 = arith.addf %61, %68 : vector<16x16x128xf32>
    %70 = vector.extract_strided_slice %0 {offsets = [7, 0], sizes = [1, 128], strides = [1, 1]} : vector<12x128xf32> to vector<1x128xf32>
    %71 = vector.shape_cast %70 : vector<1x128xf32> to vector<128xf32>
    %72 = vector.extract_strided_slice %62 {offsets = [0, 8, 0], sizes = [16, 16, 128], strides = [1, 1, 1]} : vector<16x32x128xf32> to vector<16x16x128xf32>
    %73 = vector.shape_cast %71 : vector<128xf32> to vector<1x1x128xf32>
    %74 = vector.broadcast %73 : vector<1x1x128xf32> to vector<16x16x128xf32>
    %75 = arith.mulf %74, %72 : vector<16x16x128xf32>
    %76 = arith.addf %69, %75 : vector<16x16x128xf32>
    %77 = vector.extract_strided_slice %0 {offsets = [8, 0], sizes = [1, 128], strides = [1, 1]} : vector<12x128xf32> to vector<1x128xf32>
    %78 = vector.shape_cast %77 : vector<1x128xf32> to vector<128xf32>
    %79 = vector.extract_strided_slice %62 {offsets = [0, 9, 0], sizes = [16, 16, 128], strides = [1, 1, 1]} : vector<16x32x128xf32> to vector<16x16x128xf32>
    %80 = vector.shape_cast %78 : vector<128xf32> to vector<1x1x128xf32>
    %81 = vector.broadcast %80 : vector<1x1x128xf32> to vector<16x16x128xf32>
    %82 = arith.mulf %81, %79 : vector<16x16x128xf32>
    %83 = arith.addf %76, %82 : vector<16x16x128xf32>
    %cst_25 = arith.constant 5.000000e-01 : f32
    %84 = vector.broadcast %cst_25 : f32 to vector<16x16x128xf32>
    %85 = arith.mulf %84, %83 : vector<16x16x128xf32>
    %cst_26 = arith.constant 4.471500e-02 : f32
    %86 = vector.broadcast %cst_26 : f32 to vector<16x16x128xf32>
    %87 = arith.mulf %86, %83 : vector<16x16x128xf32>
    %88 = arith.mulf %87, %83 : vector<16x16x128xf32>
    %89 = arith.mulf %88, %83 : vector<16x16x128xf32>
    %90 = arith.addf %83, %89 : vector<16x16x128xf32>
    %cst_27 = arith.constant 0.797884583 : f32
    %91 = vector.broadcast %cst_27 : f32 to vector<16x16x128xf32>
    %92 = arith.mulf %91, %90 : vector<16x16x128xf32>
    %93 = math.tanh %92 : vector<16x16x128xf32>
    %cst_28 = arith.constant 1.000000e+00 : f32
    %94 = vector.broadcast %cst_28 : f32 to vector<16x16x128xf32>
    %95 = arith.addf %94, %93 : vector<16x16x128xf32>
    %96 = arith.mulf %85, %95 : vector<16x16x128xf32>
    %97 = vector.extract_strided_slice %0 {offsets = [10, 0], sizes = [1, 128], strides = [1, 1]} : vector<12x128xf32> to vector<1x128xf32>
    %98 = vector.shape_cast %97 : vector<1x128xf32> to vector<128xf32>
    %99 = vector.shape_cast %98 : vector<128xf32> to vector<1x1x128xf32>
    %100 = vector.broadcast %99 : vector<1x1x128xf32> to vector<16x16x128xf32>
    %101 = arith.mulf %96, %100 : vector<16x16x128xf32>
    %102 = vector.extract_strided_slice %0 {offsets = [11, 0], sizes = [1, 128], strides = [1, 1]} : vector<12x128xf32> to vector<1x128xf32>
    %103 = vector.shape_cast %102 : vector<1x128xf32> to vector<128xf32>
    %104 = vector.shape_cast %103 : vector<128xf32> to vector<1x1x128xf32>
    %105 = vector.broadcast %104 : vector<1x1x128xf32> to vector<16x16x128xf32>
    %106 = arith.addf %101, %105 : vector<16x16x128xf32>
    %c1_29 = arith.constant 1 : index
    %c8_30 = arith.constant 8 : index
    %c0_31 = arith.constant 0 : index
    %107 = vector.load %arg5[%c1_29, %c8_30, %c0_31] : memref<18x32x128xf32, #tpu.memory_space<vmem>>, vector<16x16x128xf32>
    %108 = arith.addf %106, %107 : vector<16x16x128xf32>
    %c0_32 = arith.constant 0 : index
    %c0_33 = arith.constant 0 : index
    %c0_34 = arith.constant 0 : index
    %c0_35 = arith.constant 0 : index
    %109 = vector.load %arg4[%c0_32, %c0_33, %c0_34, %c0_35] : memref<1x16x16x128xf32, #tpu.memory_space<vmem>>, vector<1x16x16x128xf32>
    %110 = vector.shape_cast %109 : vector<1x16x16x128xf32> to vector<16x16x128xf32>
    %111 = vector.shape_cast %108 : vector<16x16x128xf32> to vector<1x16x16x128xf32>
    tpu.vector_store %arg4[%c0_32, %c0_33, %c0_34, %c0_35], %111 {strides = array<i32>} : memref<1x16x16x128xf32, #tpu.memory_space<vmem>>, vector<1x16x16x128xf32>,
    return
  }
  func.func @transform_0(%arg0: i32, %arg1: i32) -> (i32, i32, i32, i32) {
    %c0_i32 = arith.constant 0 : i32
    %c0_i32_0 = arith.constant 0 : i32
    %c0_i32_1 = arith.constant 0 : i32
    return %arg0, %c0_i32, %c0_i32_0, %arg1 : i32, i32, i32, i32
  }
  func.func @transform_1(%arg0: i32, %arg1: i32) -> (i32, i32) {
    %c0_i32 = arith.constant 0 : i32
    %c0_i32_0 = arith.constant 0 : i32
    return %c0_i32, %arg1 : i32, i32
  }
  func.func @transform_2(%arg0: i32, %arg1: i32) -> (i32, i32, i32, i32) {
    %c0_i32 = arith.constant 0 : i32
    %c0_i32_0 = arith.constant 0 : i32
    %c0_i32_1 = arith.constant 0 : i32
    return %arg0, %c0_i32, %c0_i32_0, %arg1 : i32, i32, i32, i32
  }
}

</mosaic_0001>

<llo_original>
// kernel: tpu_custom_call.1
$region0: #{tpu_custom_call.1}
  #allocation0 [shape = 'u32[]', space=smem, size = 0x4, offset = 0x4, fixed_abs, tag = 'smem constant byte address 0x4 - core index']
  #allocation1 [shape = 'u32[144,128]{1,0:T(1,128)}', space=vmem, size = 0x12000, scoped, tag = 'internal scratch']
  #allocation2 [shape = 'f32[18,32,128]{2,1,0:T(8,128)}', space=vmem, size = 0x48000, scoped, tag = 'scratch operand']
  %s0 = inlined_call_operand.hbm [shape: f32[2,16,16,128], index: 0, kind: input, shape index: {}]
  %s1 = inlined_call_operand.hbm [shape: f32[12,128], index: 1, kind: input, shape index: {}]
  %s2 = inlined_call_operand.hbm [shape: f32[2,16,16,128], index: 2, kind: output, shape index: {}]
  %s3 = sld [smem:[#allocation0]]
  $region49: #{tpu_custom_call.1} parent=0
    _
  %s5 = ssub.s32 1, %s3
  %s6 = scalar_select 0, %s5, %s3
  $region1: #{tpu_custom_call.1} parent=0
    #allocation3 [shape = 'u8[262144]{0}', space=vmem, size = 0x40000, scoped, tag = 'input window, operand 0']
    #allocation4 [shape = 's32[2]{0}', space=sflag, size = 0x8, scoped, tag = 'scoped memory for tpu_custom_call.1']
    #allocation5 [shape = 's32[2]{0}', space=sflag, size = 0x8, scoped, tag = 'scoped memory for tpu_custom_call.1']
    #allocation6 [shape = 'u8[8192]{0}', space=vmem, size = 0x2000, scoped, tag = 'input window, operand 1, single buffered']
    #allocation7 [shape = 's32[1]{0}', space=sflag, size = 0x4, scoped, tag = 'scoped memory for tpu_custom_call.1']
    #allocation8 [shape = 'u8[262144]{0}', space=vmem, size = 0x40000, scoped, tag = 'output window, operand 0']
    %7 = vsyncpa [#allocation4], 0
    %s8 = scalar_lea.sflag [#allocation4], 1
    %9 = vsyncpa %s8, 0
    %10 = vsyncpa [#allocation7], 0
    %11 = vsyncpa [#allocation5], 0
    %s12 = scalar_lea.sflag [#allocation5], 1
    %13 = vsyncpa %s12, 0
    loop: start=0, step=1, limit=4
    $region2: #{tpu_custom_call.1} parent=1 // loop_pre_header
      _
    $region3: #{tpu_custom_call.1} parent=1 // loop_header
      %s15 = sphi 0, %s19
      %p16 = scmp.ge.s32.totalorder %s15, 4
      %s22 = sphi 0, %s34
      %s23 = sphi 0, %s30
      %s24 = sphi 0, %s22
      %s25 = sphi 0, %s23
      %s26 = sphi 0, %s24
      %s27 = sphi 0, %s25
      %s39 = sphi 0, %s41
      %s42 = sphi 0, %s39
      %s43 = sphi 0, %s42
      %s59 = sphi 0, %s43
      %s65 = sphi 0, %s67
      %s68 = sphi 0, %s65
      %s69 = sphi 0, %s68
      %s85 = sphi 0, %s69
      %s93 = sphi 0, %s95
      %s96 = sphi 0, %s93
      %s97 = sphi 0, %s96
      %s113 = sphi 0, %s97
    $region4: #{tpu_custom_call.1} parent=1 // loop_header_branch
      %18 = sbr.rel (%p16) target = $region8
    $region5: #{tpu_custom_call.1} parent=1 // loop_body
      %s20 = ssub.s32 %s15, 1
      %s21 = ssub.s32 %s15, 2
      %s28 = sadd.s32 1, %s23
      %p29 = scmp.ge.s32.totalorder %s28, 1
      %s30 = scalar_select %p29, 0, %s28
      %s31 = sadd.s32 1, %s22
      %s32 = scalar_select %p29, %s31, %s22
      %p33 = scmp.ge.s32.totalorder %s32, 2
      %s34 = scalar_select %p33, 0, %s32
      %s35 = ssub.s32 %s22, %s34
      %s36 = ssub.s32 %s23, %s30
      %s37 = sor.u32 %s35, %s36
      %p38 = scmp.eq.s32.totalorder %s37, 0
      %s40 = sadd.s32 %s39, 1
      %s41 = scalar_select %p38, %s39, %s40
      %p44 = pneg %p38
      %p45 = scmp.eq.s32.totalorder %s15, 1
      %p46 = por %p44, %p45
      %p47 = scmp.ne.s32.totalorder %s39, %s42
      %p48 = scmp.eq.s32.totalorder %s15, 0
      %p49 = por %p47, %p48
      %p50 = scmp.ne.s32.totalorder %s39, %s42
      %p51 = scmp.eq.s32.totalorder %s20, 1
      %p52 = por %p50, %p51
      %p53 = scmp.ne.s32.totalorder %s42, %s43
      %p54 = scmp.eq.s32.totalorder %s20, 0
      %p55 = por %p53, %p54
      %p56 = scmp.ne.s32.totalorder %s42, %s43
      %p57 = scmp.eq.s32.totalorder %s21, 1
      %p58 = por %p56, %p57
      %p60 = scmp.ne.s32.totalorder %s43, %s59
      %p61 = scmp.eq.s32.totalorder %s21, 0
      %p62 = por %p60, %p61
      %s63 = ssub.s32 %s23, %s30
      %p64 = scmp.eq.s32.totalorder %s63, 0
      %s66 = sadd.s32 %s65, 1
      %s67 = scalar_select %p64, %s65, %s66
      %p70 = pneg %p64
      %p71 = scmp.eq.s32.totalorder %s15, 1
      %p72 = por %p70, %p71
      %p73 = scmp.ne.s32.totalorder %s65, %s68
      %p74 = scmp.eq.s32.totalorder %s15, 0
      %p75 = por %p73, %p74
      %p76 = scmp.ne.s32.totalorder %s65, %s68
      %p77 = scmp.eq.s32.totalorder %s20, 1
      %p78 = por %p76, %p77
      %p79 = scmp.ne.s32.totalorder %s68, %s69
      %p80 = scmp.eq.s32.totalorder %s20, 0
      %p81 = por %p79, %p80
      %p82 = scmp.ne.s32.totalorder %s68, %s69
      %p83 = scmp.eq.s32.totalorder %s21, 1
      %p84 = por %p82, %p83
      %p86 = scmp.ne.s32.totalorder %s69, %s85
      %p87 = scmp.eq.s32.totalorder %s21, 0
      %p88 = por %p86, %p87
      %s89 = ssub.s32 %s22, %s34
      %s90 = ssub.s32 %s23, %s30
      %s91 = sor.u32 %s89, %s90
      %p92 = scmp.eq.s32.totalorder %s91, 0
      %s94 = sadd.s32 %s93, 1
      %s95 = scalar_select %p92, %s93, %s94
      %p98 = pneg %p92
      %p99 = scmp.eq.s32.totalorder %s15, 1
      %p100 = por %p98, %p99
      %p101 = scmp.ne.s32.totalorder %s93, %s96
      %p102 = scmp.eq.s32.totalorder %s15, 0
      %p103 = por %p101, %p102
      %p104 = scmp.ne.s32.totalorder %s93, %s96
      %p105 = scmp.eq.s32.totalorder %s20, 1
      %p106 = por %p104, %p105
      %p107 = scmp.ne.s32.totalorder %s96, %s97
      %p108 = scmp.eq.s32.totalorder %s20, 0
      %p109 = por %p107, %p108
      %p110 = scmp.ne.s32.totalorder %s96, %s97
      %p111 = scmp.eq.s32.totalorder %s21, 1
      %p112 = por %p110, %p111
      %p114 = scmp.ne.s32.totalorder %s97, %s113
      %p115 = scmp.eq.s32.totalorder %s21, 0
      %p116 = por %p114, %p115
      %p117 = scmp.le.s32.totalorder 1, %s15
      %p118 = scmp.lt.s32.totalorder %s15, 3
      %p119 = pnand %p117, %p118
      %p120 = pneg %p119
      // Predicated region
      $region9: #{tpu_custom_call.1} parent=5 // pred_check
        _
      $region10: #{tpu_custom_call.1} parent=5 // pred_check_branch
        %122 = sbr.rel (%p119) target = $region12
      $region11: #{tpu_custom_call.1} parent=5 // pred_region
        %s123 = ssub.s32 %s15, 1
        // Predicated region
        $region13: #{tpu_custom_call.1} parent=11 // pred_check
          %p124 = pneg %p81
        $region14: #{tpu_custom_call.1} parent=11 // pred_check_branch
          %126 = sbr.rel (%p124) target = $region16
        $region15: #{tpu_custom_call.1} parent=11 // pred_region
          %s128 = ssub.s32 256, 256
          %129 = vsyncadd [#allocation7], %s128
          %s130 = smul.addr %s25, 128
          %s131 = scalar_lea.hbm %s1, %s130
          %s132 = sshll.u32 [#allocation6], 4
          %s133 = int_to_ptr.vmem [resolvable:$true] %s132
          %138 = dma.hbm_to_vmem [thread:$0]  %s131, 256, %s133, [#allocation7], 128, 128, 8
        $region16: #{tpu_custom_call.1} parent=11 // pred_fallthru
          _
      $region12: #{tpu_custom_call.1} parent=5 // pred_fallthru
        _
      %p139 = scmp.lt.s32.totalorder %s15, 2
      // Predicated region
      $region17: #{tpu_custom_call.1} parent=5 // pred_check
        %p140 = pneg %p139
      $region18: #{tpu_custom_call.1} parent=5 // pred_check_branch
        %142 = sbr.rel (%p140) target = $region20
      $region19: #{tpu_custom_call.1} parent=5 // pred_region
        // Predicated region
        $region21: #{tpu_custom_call.1} parent=19 // pred_check
          %p143 = pneg %p49
        $region22: #{tpu_custom_call.1} parent=19 // pred_check_branch
          %145 = sbr.rel (%p143) target = $region24
        $region23: #{tpu_custom_call.1} parent=19 // pred_region
          %s146 = sand.u32 %s39, 1
          %s147 = scalar_lea.sflag [#allocation4], %s146
          %s148 = sand.u32 %s39, 1
          %s149 = smul.addr %s148, 256
          %s150 = scalar_lea.vmem [#allocation3], %s149
          %s152 = ssub.s32 4096, 4096
          %153 = vsyncadd %s147, %s152
          %s154 = smul.addr %s22, 32
          %s155 = sadd.s32 %s23, %s154
          %s156 = smul.addr %s155, 128
          %s157 = scalar_lea.hbm %s0, %s156
          %s158 = sshll.u32 %s150, 4
          %s159 = int_to_ptr.vmem [resolvable:$true] %s158
          %164 = dma.hbm_to_vmem [thread:$0]  %s157, 4096, %s159, %s147, 128, 128, 8
        $region24: #{tpu_custom_call.1} parent=19 // pred_fallthru
          _
      $region20: #{tpu_custom_call.1} parent=5 // pred_fallthru
        _
      %p165 = scmp.le.s32.totalorder 1, %s15
      %p166 = scmp.lt.s32.totalorder %s15, 3
      %p167 = pnand %p165, %p166
      %p168 = pneg %p167
      // Predicated region
      $region25: #{tpu_custom_call.1} parent=5 // pred_check
        _
      $region26: #{tpu_custom_call.1} parent=5 // pred_check_branch
        %170 = sbr.rel (%p167) target = $region28
      $region27: #{tpu_custom_call.1} parent=5 // pred_region
        %s171 = ssub.s32 %s15, 1
        %s172 = sand.u32 %s42, 1
        %s173 = scalar_lea.sflag [#allocation4], %s172
        %s174 = sand.u32 %s42, 1
        %s175 = smul.addr %s174, 256
        %s176 = scalar_lea.vmem [#allocation3], %s175
        // Predicated region
        $region29: #{tpu_custom_call.1} parent=27 // pred_check
          %p177 = pneg %p55
        $region30: #{tpu_custom_call.1} parent=27 // pred_check_branch
          %179 = sbr.rel (%p177) target = $region32
        $region31: #{tpu_custom_call.1} parent=27 // pred_region
          %180 = dma.done %s173, 4096
        $region32: #{tpu_custom_call.1} parent=27 // pred_fallthru
          _
        // Predicated region
        $region33: #{tpu_custom_call.1} parent=27 // pred_check
          %p181 = pneg %p81
        $region34: #{tpu_custom_call.1} parent=27 // pred_check_branch
          %183 = sbr.rel (%p181) target = $region36
        $region35: #{tpu_custom_call.1} parent=27 // pred_region
          %184 = dma.done [#allocation7], 256
        $region36: #{tpu_custom_call.1} parent=27 // pred_fallthru
          _
        %s185 = sand.u32 %s42, 1
        %s186 = scalar_lea.sflag [#allocation4], %s185
        %s187 = sand.u32 %s42, 1
        %s188 = smul.addr %s187, 256
        %s189 = scalar_lea.vmem [#allocation3], %s188
        %p190 = pneg %p55
        %p191 = pneg %p52
        %p192 = pneg %p81
        %p193 = pneg %p78
        %p194 = pneg %p109
        %p195 = pneg %p106
        %s196 = sand.u32 %s96, 1
        %s197 = scalar_lea.sflag [#allocation5], %s196
        %s198 = sand.u32 %s96, 1
        %s199 = smul.addr %s198, 256
        %s200 = scalar_lea.vmem [#allocation8], %s199
        %v201 = vld [vmem:[#allocation6] sm:$0xff]
        %v202 = vld [vmem:[#allocation6 + $0x8] sm:$0xf]
        %203 = vst [vmem:[#allocation2] sm:$0xff] 0.0
        %204 = vst [vmem:[#allocation2 + $0x8] sm:$0xff] 0.0
        %205 = vst [vmem:[#allocation2 + $0x10] sm:$0xff] 0.0
        %206 = vst [vmem:[#allocation2 + $0x18] sm:$0xff] 0.0
        %s207 = scalar_lea.vmem [#allocation2], 544
        %208 = vst [vmem:[%s207] sm:$0xff] 0.0
        %209 = vst [vmem:[%s207 + $0x8] sm:$0xff] 0.0
        %210 = vst [vmem:[%s207 + $0x10] sm:$0xff] 0.0
        %211 = vst [vmem:[%s207 + $0x18] sm:$0xff] 0.0
        %s212 = scalar_lea.vmem [#allocation2], 32
        %213 = vst [vmem:[%s212] sm:$0xff] 0.0
        %214 = vst [vmem:[%s212 + $0x20] sm:$0xff] 0.0
        %215 = vst [vmem:[%s212 + $0x40] sm:$0xff] 0.0
        %216 = vst [vmem:[%s212 + $0x60] sm:$0xff] 0.0
        %217 = vst [vmem:[%s212 + $0x80] sm:$0xff] 0.0
        %218 = vst [vmem:[%s212 + $0xa0] sm:$0xff] 0.0
        %219 = vst [vmem:[%s212 + $0xc0] sm:$0xff] 0.0
        %220 = vst [vmem:[%s212 + $0xe0] sm:$0xff] 0.0
        %221 = vst [vmem:[%s212 + $0x100] sm:$0xff] 0.0
        %222 = vst [vmem:[%s212 + $0x120] sm:$0xff] 0.0
        %223 = vst [vmem:[%s212 + $0x140] sm:$0xff] 0.0
        %224 = vst [vmem:[%s212 + $0x160] sm:$0xff] 0.0
        %225 = vst [vmem:[%s212 + $0x180] sm:$0xff] 0.0
        %226 = vst [vmem:[%s212 + $0x1a0] sm:$0xff] 0.0
        %227 = vst [vmem:[%s212 + $0x1c0] sm:$0xff] 0.0
        %228 = vst [vmem:[%s212 + $0x1e0] sm:$0xff] 0.0
        %229 = vst [vmem:[%s212 + $0x18] sm:$0xff] 0.0
        %230 = vst [vmem:[%s212 + $0x38] sm:$0xff] 0.0
        %231 = vst [vmem:[%s212 + $0x58] sm:$0xff] 0.0
        %232 = vst [vmem:[%s212 + $0x78] sm:$0xff] 0.0
        %233 = vst [vmem:[%s212 + $0x98] sm:$0xff] 0.0
        %234 = vst [vmem:[%s212 + $0xb8] sm:$0xff] 0.0
        %235 = vst [vmem:[%s212 + $0xd8] sm:$0xff] 0.0
        %236 = vst [vmem:[%s212 + $0xf8] sm:$0xff] 0.0
        %237 = vst [vmem:[%s212 + $0x118] sm:$0xff] 0.0
        %238 = vst [vmem:[%s212 + $0x138] sm:$0xff] 0.0
        %239 = vst [vmem:[%s212 + $0x158] sm:$0xff] 0.0
        %240 = vst [vmem:[%s212 + $0x178] sm:$0xff] 0.0
        %241 = vst [vmem:[%s212 + $0x198] sm:$0xff] 0.0
        %242 = vst [vmem:[%s212 + $0x1b8] sm:$0xff] 0.0
        %243 = vst [vmem:[%s212 + $0x1d8] sm:$0xff] 0.0
        %244 = vst [vmem:[%s212 + $0x1f8] sm:$0xff] 0.0
        %v245 = vld [vmem:[%s176] sm:$0xff]
        %v246 = vld [vmem:[%s176 + $0x8] sm:$0xff]
        %v247 = vld [vmem:[%s176 + $0x10] sm:$0xff]
        %v248 = vld [vmem:[%s176 + $0x18] sm:$0xff]
        %v249 = vld [vmem:[%s176 + $0x20] sm:$0xff]
        %v250 = vld [vmem:[%s176 + $0x28] sm:$0xff]
        %v251 = vld [vmem:[%s176 + $0x30] sm:$0xff]
        %v252 = vld [vmem:[%s176 + $0x38] sm:$0xff]
        %v253 = vld [vmem:[%s176 + $0x40] sm:$0xff]
        %v254 = vld [vmem:[%s176 + $0x48] sm:$0xff]
        %v255 = vld [vmem:[%s176 + $0x50] sm:$0xff]
        %v256 = vld [vmem:[%s176 + $0x58] sm:$0xff]
        %v257 = vld [vmem:[%s176 + $0x60] sm:$0xff]
        %v258 = vld [vmem:[%s176 + $0x68] sm:$0xff]
        %v259 = vld [vmem:[%s176 + $0x70] sm:$0xff]
        %v260 = vld [vmem:[%s176 + $0x78] sm:$0xff]
        %v261 = vld [vmem:[%s176 + $0x80] sm:$0xff]
        %v262 = vld [vmem:[%s176 + $0x88] sm:$0xff]
        %v263 = vld [vmem:[%s176 + $0x90] sm:$0xff]
        %v264 = vld [vmem:[%s176 + $0x98] sm:$0xff]
        %v265 = vld [vmem:[%s176 + $0xa0] sm:$0xff]
        %v266 = vld [vmem:[%s176 + $0xa8] sm:$0xff]
        %v267 = vld [vmem:[%s176 + $0xb0] sm:$0xff]
        %v268 = vld [vmem:[%s176 + $0xb8] sm:$0xff]
        %v269 = vld [vmem:[%s176 + $0xc0] sm:$0xff]
        %v270 = vld [vmem:[%s176 + $0xc8] sm:$0xff]
        %v271 = vld [vmem:[%s176 + $0xd0] sm:$0xff]
        %v272 = vld [vmem:[%s176 + $0xd8] sm:$0xff]
        %v273 = vld [vmem:[%s176 + $0xe0] sm:$0xff]
        %v274 = vld [vmem:[%s176 + $0xe8] sm:$0xff]
        %v275 = vld [vmem:[%s176 + $0xf0] sm:$0xff]
        %v276 = vld [vmem:[%s176 + $0xf8] sm:$0xff]
        %277 = vst [vmem:[%s212 + $0x8] sm:$0xff] %v245
        %278 = vst [vmem:[%s212 + $0x10] sm:$0xff] %v246
        %279 = vst [vmem:[%s212 + $0x28] sm:$0xff] %v247
        %280 = vst [vmem:[%s212 + $0x30] sm:$0xff] %v248
        %281 = vst [vmem:[%s212 + $0x48] sm:$0xff] %v249
        %282 = vst [vmem:[%s212 + $0x50] sm:$0xff] %v250
        %283 = vst [vmem:[%s212 + $0x68] sm:$0xff] %v251
        %284 = vst [vmem:[%s212 + $0x70] sm:$0xff] %v252
        %285 = vst [vmem:[%s212 + $0x88] sm:$0xff] %v253
        %286 = vst [vmem:[%s212 + $0x90] sm:$0xff] %v254
        %287 = vst [vmem:[%s212 + $0xa8] sm:$0xff] %v255
        %288 = vst [vmem:[%s212 + $0xb0] sm:$0xff] %v256
        %289 = vst [vmem:[%s212 + $0xc8] sm:$0xff] %v257
        %290 = vst [vmem:[%s212 + $0xd0] sm:$0xff] %v258
        %291 = vst [vmem:[%s212 + $0xe8] sm:$0xff] %v259
        %292 = vst [vmem:[%s212 + $0xf0] sm:$0xff] %v260
        %293 = vst [vmem:[%s212 + $0x108] sm:$0xff] %v261
        %294 = vst [vmem:[%s212 + $0x110] sm:$0xff] %v262
        %295 = vst [vmem:[%s212 + $0x128] sm:$0xff] %v263
        %296 = vst [vmem:[%s212 + $0x130] sm:$0xff] %v264
        %297 = vst [vmem:[%s212 + $0x148] sm:$0xff] %v265
        %298 = vst [vmem:[%s212 + $0x150] sm:$0xff] %v266
        %299 = vst [vmem:[%s212 + $0x168] sm:$0xff] %v267
        %300 = vst [vmem:[%s212 + $0x170] sm:$0xff] %v268
        %301 = vst [vmem:[%s212 + $0x188] sm:$0xff] %v269
        %302 = vst [vmem:[%s212 + $0x190] sm:$0xff] %v270
        %303 = vst [vmem:[%s212 + $0x1a8] sm:$0xff] %v271
        %304 = vst [vmem:[%s212 + $0x1b0] sm:$0xff] %v272
        %305 = vst [vmem:[%s212 + $0x1c8] sm:$0xff] %v273
        %306 = vst [vmem:[%s212 + $0x1d0] sm:$0xff] %v274
        %307 = vst [vmem:[%s212 + $0x1e8] sm:$0xff] %v275
        %308 = vst [vmem:[%s212 + $0x1f0] sm:$0xff] %v276
        %v309 = vld [vmem:[#allocation2] sm:$0xff]
        %v310 = vld [vmem:[#allocation2 + $0x8] sm:$0xff]
        %v311 = vld [vmem:[#allocation2 + $0x10] sm:$0xff]
        %v312 = vld [vmem:[#allocation2 + $0x18] sm:$0xff]
        %v313 = vld [vmem:[#allocation2 + $0x20] sm:$0xff]
        %v314 = vld [vmem:[#allocation2 + $0x28] sm:$0xff]
        %v315 = vld [vmem:[#allocation2 + $0x30] sm:$0xff]
        %v316 = vld [vmem:[#allocation2 + $0x38] sm:$0xff]
        %v317 = vld [vmem:[#allocation2 + $0x40] sm:$0xff]
        %v318 = vld [vmem:[#allocation2 + $0x48] sm:$0xff]
        %v319 = vld [vmem:[#allocation2 + $0x50] sm:$0xff]
        %v320 = vld [vmem:[#allocation2 + $0x58] sm:$0xff]
        %v321 = vld [vmem:[#allocation2 + $0x60] sm:$0xff]
        %v322 = vld [vmem:[#allocation2 + $0x68] sm:$0xff]
        %v323 = vld [vmem:[#allocation2 + $0x70] sm:$0xff]
        %v324 = vld [vmem:[#allocation2 + $0x78] sm:$0xff]
        %v325 = vld [vmem:[#allocation2 + $0x80] sm:$0xff]
        %v326 = vld [vmem:[#allocation2 + $0x88] sm:$0xff]
        %v327 = vld [vmem:[#allocation2 + $0x90] sm:$0xff]
        %v328 = vld [vmem:[#allocation2 + $0x98] sm:$0xff]
        %v329 = vld [vmem:[#allocation2 + $0xa0] sm:$0xff]
        %v330 = vld [vmem:[#allocation2 + $0xa8] sm:$0xff]
        %v331 = vld [vmem:[#allocation2 + $0xb0] sm:$0xff]
        %v332 = vld [vmem:[#allocation2 + $0xb8] sm:$0xff]
        %v333 = vld [vmem:[#allocation2 + $0xc0] sm:$0xff]
        %v334 = vld [vmem:[#allocation2 + $0xc8] sm:$0xff]
        %v335 = vld [vmem:[#allocation2 + $0xd0] sm:$0xff]
        %v336 = vld [vmem:[#allocation2 + $0xd8] sm:$0xff]
        %v337 = vld [vmem:[#allocation2 + $0xe0] sm:$0xff]
        %v338 = vld [vmem:[#allocation2 + $0xe8] sm:$0xff]
        %v339 = vld [vmem:[#allocation2 + $0xf0] sm:$0xff]
        %v340 = vld [vmem:[#allocation2 + $0xf8] sm:$0xff]
        %v341 = vld [vmem:[#allocation2 + $0x100] sm:$0xff]
        %v342 = vld [vmem:[#allocation2 + $0x108] sm:$0xff]
        %v343 = vld [vmem:[#allocation2 + $0x110] sm:$0xff]
        %v344 = vld [vmem:[#allocation2 + $0x118] sm:$0xff]
        %v345 = vld [vmem:[#allocation2 + $0x120] sm:$0xff]
        %v346 = vld [vmem:[#allocation2 + $0x128] sm:$0xff]
        %v347 = vld [vmem:[#allocation2 + $0x130] sm:$0xff]
        %v348 = vld [vmem:[#allocation2 + $0x138] sm:$0xff]
        %v349 = vld [vmem:[#allocation2 + $0x140] sm:$0xff]
        %v350 = vld [vmem:[#allocation2 + $0x148] sm:$0xff]
        %v351 = vld [vmem:[#allocation2 + $0x150] sm:$0xff]
        %v352 = vld [vmem:[#allocation2 + $0x158] sm:$0xff]
        %v353 = vld [vmem:[#allocation2 + $0x160] sm:$0xff]
        %v354 = vld [vmem:[#allocation2 + $0x168] sm:$0xff]
        %v355 = vld [vmem:[#allocation2 + $0x170] sm:$0xff]
        %v356 = vld [vmem:[#allocation2 + $0x178] sm:$0xff]
        %v357 = vld [vmem:[#allocation2 + $0x180] sm:$0xff]
        %v358 = vld [vmem:[#allocation2 + $0x188] sm:$0xff]
        %v359 = vld [vmem:[#allocation2 + $0x190] sm:$0xff]
        %v360 = vld [vmem:[#allocation2 + $0x198] sm:$0xff]
        %v361 = vld [vmem:[#allocation2 + $0x1a0] sm:$0xff]
        %v362 = vld [vmem:[#allocation2 + $0x1a8] sm:$0xff]
        %v363 = vld [vmem:[#allocation2 + $0x1b0] sm:$0xff]
        %v364 = vld [vmem:[#allocation2 + $0x1b8] sm:$0xff]
        %v365 = vld [vmem:[#allocation2 + $0x1c0] sm:$0xff]
        %v366 = vld [vmem:[#allocation2 + $0x1c8] sm:$0xff]
        %v367 = vld [vmem:[#allocation2 + $0x1d0] sm:$0xff]
        %v368 = vld [vmem:[#allocation2 + $0x1d8] sm:$0xff]
        %v369 = vld [vmem:[#allocation2 + $0x1e0] sm:$0xff]
        %v370 = vld [vmem:[#allocation2 + $0x1e8] sm:$0xff]
        %v371 = vld [vmem:[#allocation2 + $0x1f0] sm:$0xff]
        %v372 = vld [vmem:[#allocation2 + $0x1f8] sm:$0xff]
        %v373 = vlaneseq
        %v374 = vshrl.u32 %v373, 7
        %v375 = vsub.s32 0, %v374
        %v376 = vrot.slane %v201, %v375
        %v377 = vmul.f32 %v376, %v309
        %v378 = vmul.f32 %v376, %v310
        %v379 = vmul.f32 %v376, %v311
        %v380 = vmul.f32 %v376, %v313
        %v381 = vmul.f32 %v376, %v314
        %v382 = vmul.f32 %v376, %v315
        %v383 = vmul.f32 %v376, %v317
        %v384 = vmul.f32 %v376, %v318
        %v385 = vmul.f32 %v376, %v319
        %v386 = vmul.f32 %v376, %v321
        %v387 = vmul.f32 %v376, %v322
        %v388 = vmul.f32 %v376, %v323
        %v389 = vmul.f32 %v376, %v325
        %v390 = vmul.f32 %v376, %v326
        %v391 = vmul.f32 %v376, %v327
        %v392 = vmul.f32 %v376, %v329
        %v393 = vmul.f32 %v376, %v330
        %v394 = vmul.f32 %v376, %v331
        %v395 = vmul.f32 %v376, %v333
        %v396 = vmul.f32 %v376, %v334
        %v397 = vmul.f32 %v376, %v335
        %v398 = vmul.f32 %v376, %v337
        %v399 = vmul.f32 %v376, %v338
        %v400 = vmul.f32 %v376, %v339
        %v401 = vmul.f32 %v376, %v341
        %v402 = vmul.f32 %v376, %v342
        %v403 = vmul.f32 %v376, %v343
        %v404 = vmul.f32 %v376, %v345
        %v405 = vmul.f32 %v376, %v346
        %v406 = vmul.f32 %v376, %v347
        %v407 = vmul.f32 %v376, %v349
        %v408 = vmul.f32 %v376, %v350
        %v409 = vmul.f32 %v376, %v351
        %v410 = vmul.f32 %v376, %v353
        %v411 = vmul.f32 %v376, %v354
        %v412 = vmul.f32 %v376, %v355
        %v413 = vmul.f32 %v376, %v357
        %v414 = vmul.f32 %v376, %v358
        %v415 = vmul.f32 %v376, %v359
        %v416 = vmul.f32 %v376, %v361
        %v417 = vmul.f32 %v376, %v362
        %v418 = vmul.f32 %v376, %v363
        %v419 = vmul.f32 %v376, %v365
        %v420 = vmul.f32 %v376, %v366
        %v421 = vmul.f32 %v376, %v367
        %v422 = vmul.f32 %v376, %v369
        %v423 = vmul.f32 %v376, %v370
        %v424 = vmul.f32 %v376, %v371
        %v425 = vlaneseq
        %v426 = vshrl.u32 %v425, 7
        %v427 = vsub.s32 1, %v426
        %v428 = vrot.slane %v202, %v427
        %v429 = vadd.f32 %v428, %v377
        %v430 = vadd.f32 %v428, %v378
        %v431 = vadd.f32 %v428, %v379
        %v432 = vadd.f32 %v428, %v380
        %v433 = vadd.f32 %v428, %v381
        %v434 = vadd.f32 %v428, %v382
        %v435 = vadd.f32 %v428, %v383
        %v436 = vadd.f32 %v428, %v384
        %v437 = vadd.f32 %v428, %v385
        %v438 = vadd.f32 %v428, %v386
        %v439 = vadd.f32 %v428, %v387
        %v440 = vadd.f32 %v428, %v388
        %v441 = vadd.f32 %v428, %v389
        %v442 = vadd.f32 %v428, %v390
        %v443 = vadd.f32 %v428, %v391
        %v444 = vadd.f32 %v428, %v392
        %v445 = vadd.f32 %v428, %v393
        %v446 = vadd.f32 %v428, %v394
        %v447 = vadd.f32 %v428, %v395
        %v448 = vadd.f32 %v428, %v396
        %v449 = vadd.f32 %v428, %v397
        %v450 = vadd.f32 %v428, %v398
        %v451 = vadd.f32 %v428, %v399
        %v452 = vadd.f32 %v428, %v400
        %v453 = vadd.f32 %v428, %v401
        %v454 = vadd.f32 %v428, %v402
        %v455 = vadd.f32 %v428, %v403
        %v456 = vadd.f32 %v428, %v404
        %v457 = vadd.f32 %v428, %v405
        %v458 = vadd.f32 %v428, %v406
        %v459 = vadd.f32 %v428, %v407
        %v460 = vadd.f32 %v428, %v408
        %v461 = vadd.f32 %v428, %v409
        %v462 = vadd.f32 %v428, %v410
        %v463 = vadd.f32 %v428, %v411
        %v464 = vadd.f32 %v428, %v412
        %v465 = vadd.f32 %v428, %v413
        %v466 = vadd.f32 %v428, %v414
        %v467 = vadd.f32 %v428, %v415
        %v468 = vadd.f32 %v428, %v416
        %v469 = vadd.f32 %v428, %v417
        %v470 = vadd.f32 %v428, %v418
        %v471 = vadd.f32 %v428, %v419
        %v472 = vadd.f32 %v428, %v420
        %v473 = vadd.f32 %v428, %v421
        %v474 = vadd.f32 %v428, %v422
        %v475 = vadd.f32 %v428, %v423
        %v476 = vadd.f32 %v428, %v424
        %v477 = vlaneseq
        %v478 = vshrl.u32 %v477, 7
        %v479 = vsub.s32 1, %v478
        %v480 = vrot.slane %v201, %v479
        %v481 = vmul.f32 %v480, %v310
        %v482 = vmul.f32 %v480, %v311
        %v483 = vmul.f32 %v480, %v314
        %v484 = vmul.f32 %v480, %v315
        %v485 = vmul.f32 %v480, %v318
        %v486 = vmul.f32 %v480, %v319
        %v487 = vmul.f32 %v480, %v322
        %v488 = vmul.f32 %v480, %v323
        %v489 = vmul.f32 %v480, %v326
        %v490 = vmul.f32 %v480, %v327
        %v491 = vmul.f32 %v480, %v330
        %v492 = vmul.f32 %v480, %v331
        %v493 = vmul.f32 %v480, %v334
        %v494 = vmul.f32 %v480, %v335
        %v495 = vmul.f32 %v480, %v338
        %v496 = vmul.f32 %v480, %v339
        %v497 = vmul.f32 %v480, %v342
        %v498 = vmul.f32 %v480, %v343
        %v499 = vmul.f32 %v480, %v346
        %v500 = vmul.f32 %v480, %v347
        %v501 = vmul.f32 %v480, %v350
        %v502 = vmul.f32 %v480, %v351
        %v503 = vmul.f32 %v480, %v354
        %v504 = vmul.f32 %v480, %v355
        %v505 = vmul.f32 %v480, %v358
        %v506 = vmul.f32 %v480, %v359
        %v507 = vmul.f32 %v480, %v362
        %v508 = vmul.f32 %v480, %v363
        %v509 = vmul.f32 %v480, %v366
        %v510 = vmul.f32 %v480, %v367
        %v511 = vmul.f32 %v480, %v370
        %v512 = vmul.f32 %v480, %v371
        %vm545 = vcmask 1046528
        %v546 = vrot.slane %v481, 1
        %v547 = vrot.slane %v482, 1
        %v548 = vsel %vm545, %v546, %v547
        %v549 = vrot.slane %v483, 1
        %v550 = vrot.slane %v484, 1
        %v551 = vsel %vm545, %v549, %v550
        %v552 = vrot.slane %v485, 1
        %v553 = vrot.slane %v486, 1
        %v554 = vsel %vm545, %v552, %v553
        %v555 = vrot.slane %v487, 1
        %v556 = vrot.slane %v488, 1
        %v557 = vsel %vm545, %v555, %v556
        %v558 = vrot.slane %v489, 1
        %v559 = vrot.slane %v490, 1
        %v560 = vsel %vm545, %v558, %v559
        %v561 = vrot.slane %v491, 1
        %v562 = vrot.slane %v492, 1
        %v563 = vsel %vm545, %v561, %v562
        %v564 = vrot.slane %v493, 1
        %v565 = vrot.slane %v494, 1
        %v566 = vsel %vm545, %v564, %v565
        %v567 = vrot.slane %v495, 1
        %v568 = vrot.slane %v496, 1
        %v569 = vsel %vm545, %v567, %v568
        %v570 = vrot.slane %v497, 1
        %v571 = vrot.slane %v498, 1
        %v572 = vsel %vm545, %v570, %v571
        %v573 = vrot.slane %v499, 1
        %v574 = vrot.slane %v500, 1
        %v575 = vsel %vm545, %v573, %v574
        %v576 = vrot.slane %v501, 1
        %v577 = vrot.slane %v502, 1
        %v578 = vsel %vm545, %v576, %v577
        %v579 = vrot.slane %v503, 1
        %v580 = vrot.slane %v504, 1
        %v581 = vsel %vm545, %v579, %v580
        %v582 = vrot.slane %v505, 1
        %v583 = vrot.slane %v506, 1
        %v584 = vsel %vm545, %v582, %v583
        %v585 = vrot.slane %v507, 1
        %v586 = vrot.slane %v508, 1
        %v587 = vsel %vm545, %v585, %v586
        %v588 = vrot.slane %v509, 1
        %v589 = vrot.slane %v510, 1
        %v590 = vsel %vm545, %v588, %v589
        %v591 = vrot.slane %v511, 1
        %v592 = vrot.slane %v512, 1
        %v593 = vsel %vm545, %v591, %v592
        %v642 = vadd.f32 %v429, %v546
        %v643 = vadd.f32 %v430, %v548
        %v644 = vadd.f32 %v431, %v547
        %v645 = vadd.f32 %v432, %v549
        %v646 = vadd.f32 %v433, %v551
        %v647 = vadd.f32 %v434, %v550
        %v648 = vadd.f32 %v435, %v552
        %v649 = vadd.f32 %v436, %v554
        %v650 = vadd.f32 %v437, %v553
        %v651 = vadd.f32 %v438, %v555
        %v652 = vadd.f32 %v439, %v557
        %v653 = vadd.f32 %v440, %v556
        %v654 = vadd.f32 %v441, %v558
        %v655 = vadd.f32 %v442, %v560
        %v656 = vadd.f32 %v443, %v559
        %v657 = vadd.f32 %v444, %v561
        %v658 = vadd.f32 %v445, %v563
        %v659 = vadd.f32 %v446, %v562
        %v660 = vadd.f32 %v447, %v564
        %v661 = vadd.f32 %v448, %v566
        %v662 = vadd.f32 %v449, %v565
        %v663 = vadd.f32 %v450, %v567
        %v664 = vadd.f32 %v451, %v569
        %v665 = vadd.f32 %v452, %v568
        %v666 = vadd.f32 %v453, %v570
        %v667 = vadd.f32 %v454, %v572
        %v668 = vadd.f32 %v455, %v571
        %v669 = vadd.f32 %v456, %v573
        %v670 = vadd.f32 %v457, %v575
        %v671 = vadd.f32 %v458, %v574
        %v672 = vadd.f32 %v459, %v576
        %v673 = vadd.f32 %v460, %v578
        %v674 = vadd.f32 %v461, %v577
        %v675 = vadd.f32 %v462, %v579
        %v676 = vadd.f32 %v463, %v581
        %v677 = vadd.f32 %v464, %v580
        %v678 = vadd.f32 %v465, %v582
        %v679 = vadd.f32 %v466, %v584
        %v680 = vadd.f32 %v467, %v583
        %v681 = vadd.f32 %v468, %v585
        %v682 = vadd.f32 %v469, %v587
        %v683 = vadd.f32 %v470, %v586
        %v684 = vadd.f32 %v471, %v588
        %v685 = vadd.f32 %v472, %v590
        %v686 = vadd.f32 %v473, %v589
        %v687 = vadd.f32 %v474, %v591
        %v688 = vadd.f32 %v475, %v593
        %v689 = vadd.f32 %v476, %v592
        %v690 = vlaneseq
        %v691 = vshrl.u32 %v690, 7
        %v692 = vsub.s32 2, %v691
        %v693 = vrot.slane %v201, %v692
        %v694 = vmul.f32 %v693, %v310
        %v695 = vmul.f32 %v693, %v311
        %v696 = vmul.f32 %v693, %v312
        %v697 = vmul.f32 %v693, %v314
        %v698 = vmul.f32 %v693, %v315
        %v699 = vmul.f32 %v693, %v316
        %v700 = vmul.f32 %v693, %v318
        %v701 = vmul.f32 %v693, %v319
        %v702 = vmul.f32 %v693, %v320
        %v703 = vmul.f32 %v693, %v322
        %v704 = vmul.f32 %v693, %v323
        %v705 = vmul.f32 %v693, %v324
        %v706 = vmul.f32 %v693, %v326
        %v707 = vmul.f32 %v693, %v327
        %v708 = vmul.f32 %v693, %v328
        %v709 = vmul.f32 %v693, %v330
        %v710 = vmul.f32 %v693, %v331
        %v711 = vmul.f32 %v693, %v332
        %v712 = vmul.f32 %v693, %v334
        %v713 = vmul.f32 %v693, %v335
        %v714 = vmul.f32 %v693, %v336
        %v715 = vmul.f32 %v693, %v338
        %v716 = vmul.f32 %v693, %v339
        %v717 = vmul.f32 %v693, %v340
        %v718 = vmul.f32 %v693, %v342
        %v719 = vmul.f32 %v693, %v343
        %v720 = vmul.f32 %v693, %v344
        %v721 = vmul.f32 %v693, %v346
        %v722 = vmul.f32 %v693, %v347
        %v723 = vmul.f32 %v693, %v348
        %v724 = vmul.f32 %v693, %v350
        %v725 = vmul.f32 %v693, %v351
        %v726 = vmul.f32 %v693, %v352
        %v727 = vmul.f32 %v693, %v354
        %v728 = vmul.f32 %v693, %v355
        %v729 = vmul.f32 %v693, %v356
        %v730 = vmul.f32 %v693, %v358
        %v731 = vmul.f32 %v693, %v359
        %v732 = vmul.f32 %v693, %v360
        %v733 = vmul.f32 %v693, %v362
        %v734 = vmul.f32 %v693, %v363
        %v735 = vmul.f32 %v693, %v364
        %v736 = vmul.f32 %v693, %v366
        %v737 = vmul.f32 %v693, %v367
        %v738 = vmul.f32 %v693, %v368
        %v739 = vmul.f32 %v693, %v370
        %v740 = vmul.f32 %v693, %v371
        %v741 = vmul.f32 %v693, %v372
        %vm790 = vcmask 1045504
        %v791 = vrot.slane %v694, 2
        %v792 = vrot.slane %v695, 2
        %v793 = vsel %vm790, %v791, %v792
        %v794 = vrot.slane %v696, 2
        %v795 = vsel %vm790, %v792, %v794
        %v796 = vrot.slane %v697, 2
        %v797 = vrot.slane %v698, 2
        %v798 = vsel %vm790, %v796, %v797
        %v799 = vrot.slane %v699, 2
        %v800 = vsel %vm790, %v797, %v799
        %v801 = vrot.slane %v700, 2
        %v802 = vrot.slane %v701, 2
        %v803 = vsel %vm790, %v801, %v802
        %v804 = vrot.slane %v702, 2
        %v805 = vsel %vm790, %v802, %v804
        %v806 = vrot.slane %v703, 2
        %v807 = vrot.slane %v704, 2
        %v808 = vsel %vm790, %v806, %v807
        %v809 = vrot.slane %v705, 2
        %v810 = vsel %vm790, %v807, %v809
        %v811 = vrot.slane %v706, 2
        %v812 = vrot.slane %v707, 2
        %v813 = vsel %vm790, %v811, %v812
        %v814 = vrot.slane %v708, 2
        %v815 = vsel %vm790, %v812, %v814
        %v816 = vrot.slane %v709, 2
        %v817 = vrot.slane %v710, 2
        %v818 = vsel %vm790, %v816, %v817
        %v819 = vrot.slane %v711, 2
        %v820 = vsel %vm790, %v817, %v819
        %v821 = vrot.slane %v712, 2
        %v822 = vrot.slane %v713, 2
        %v823 = vsel %vm790, %v821, %v822
        %v824 = vrot.slane %v714, 2
        %v825 = vsel %vm790, %v822, %v824
        %v826 = vrot.slane %v715, 2
        %v827 = vrot.slane %v716, 2
        %v828 = vsel %vm790, %v826, %v827
        %v829 = vrot.slane %v717, 2
        %v830 = vsel %vm790, %v827, %v829
        %v831 = vrot.slane %v718, 2
        %v832 = vrot.slane %v719, 2
        %v833 = vsel %vm790, %v831, %v832
        %v834 = vrot.slane %v720, 2
        %v835 = vsel %vm790, %v832, %v834
        %v836 = vrot.slane %v721, 2
        %v837 = vrot.slane %v722, 2
        %v838 = vsel %vm790, %v836, %v837
        %v839 = vrot.slane %v723, 2
        %v840 = vsel %vm790, %v837, %v839
        %v841 = vrot.slane %v724, 2
        %v842 = vrot.slane %v725, 2
        %v843 = vsel %vm790, %v841, %v842
        %v844 = vrot.slane %v726, 2
        %v845 = vsel %vm790, %v842, %v844
        %v846 = vrot.slane %v727, 2
        %v847 = vrot.slane %v728, 2
        %v848 = vsel %vm790, %v846, %v847
        %v849 = vrot.slane %v729, 2
        %v850 = vsel %vm790, %v847, %v849
        %v851 = vrot.slane %v730, 2
        %v852 = vrot.slane %v731, 2
        %v853 = vsel %vm790, %v851, %v852
        %v854 = vrot.slane %v732, 2
        %v855 = vsel %vm790, %v852, %v854
        %v856 = vrot.slane %v733, 2
        %v857 = vrot.slane %v734, 2
        %v858 = vsel %vm790, %v856, %v857
        %v859 = vrot.slane %v735, 2
        %v860 = vsel %vm790, %v857, %v859
        %v861 = vrot.slane %v736, 2
        %v862 = vrot.slane %v737, 2
        %v863 = vsel %vm790, %v861, %v862
        %v864 = vrot.slane %v738, 2
        %v865 = vsel %vm790, %v862, %v864
        %v866 = vrot.slane %v739, 2
        %v867 = vrot.slane %v740, 2
        %v868 = vsel %vm790, %v866, %v867
        %v869 = vrot.slane %v741, 2
        %v870 = vsel %vm790, %v867, %v869
        %v919 = vadd.f32 %v642, %v791
        %v920 = vadd.f32 %v643, %v793
        %v921 = vadd.f32 %v644, %v795
        %v922 = vadd.f32 %v645, %v796
        %v923 = vadd.f32 %v646, %v798
        %v924 = vadd.f32 %v647, %v800
        %v925 = vadd.f32 %v648, %v801
        %v926 = vadd.f32 %v649, %v803
        %v927 = vadd.f32 %v650, %v805
        %v928 = vadd.f32 %v651, %v806
        %v929 = vadd.f32 %v652, %v808
        %v930 = vadd.f32 %v653, %v810
        %v931 = vadd.f32 %v654, %v811
        %v932 = vadd.f32 %v655, %v813
        %v933 = vadd.f32 %v656, %v815
        %v934 = vadd.f32 %v657, %v816
        %v935 = vadd.f32 %v658, %v818
        %v936 = vadd.f32 %v659, %v820
        %v937 = vadd.f32 %v660, %v821
        %v938 = vadd.f32 %v661, %v823
        %v939 = vadd.f32 %v662, %v825
        %v940 = vadd.f32 %v663, %v826
        %v941 = vadd.f32 %v664, %v828
        %v942 = vadd.f32 %v665, %v830
        %v943 = vadd.f32 %v666, %v831
        %v944 = vadd.f32 %v667, %v833
        %v945 = vadd.f32 %v668, %v835
        %v946 = vadd.f32 %v669, %v836
        %v947 = vadd.f32 %v670, %v838
        %v948 = vadd.f32 %v671, %v840
        %v949 = vadd.f32 %v672, %v841
        %v950 = vadd.f32 %v673, %v843
        %v951 = vadd.f32 %v674, %v845
        %v952 = vadd.f32 %v675, %v846
        %v953 = vadd.f32 %v676, %v848
        %v954 = vadd.f32 %v677, %v850
        %v955 = vadd.f32 %v678, %v851
        %v956 = vadd.f32 %v679, %v853
        %v957 = vadd.f32 %v680, %v855
        %v958 = vadd.f32 %v681, %v856
        %v959 = vadd.f32 %v682, %v858
        %v960 = vadd.f32 %v683, %v860
        %v961 = vadd.f32 %v684, %v861
        %v962 = vadd.f32 %v685, %v863
        %v963 = vadd.f32 %v686, %v865
        %v964 = vadd.f32 %v687, %v866
        %v965 = vadd.f32 %v688, %v868
        %v966 = vadd.f32 %v689, %v870
        %v967 = vld [vmem:[%s212] sm:$0xff]
        %v968 = vld [vmem:[%s212 + $0x8] sm:$0xff]
        %v969 = vld [vmem:[%s212 + $0x10] sm:$0xff]
        %v970 = vld [vmem:[%s212 + $0x18] sm:$0xff]
        %v971 = vld [vmem:[%s212 + $0x20] sm:$0xff]
        %v972 = vld [vmem:[%s212 + $0x28] sm:$0xff]
        %v973 = vld [vmem:[%s212 + $0x30] sm:$0xff]
        %v974 = vld [vmem:[%s212 + $0x38] sm:$0xff]
        %v975 = vld [vmem:[%s212 + $0x40] sm:$0xff]
        %v976 = vld [vmem:[%s212 + $0x48] sm:$0xff]
        %v977 = vld [vmem:[%s212 + $0x50] sm:$0xff]
        %v978 = vld [vmem:[%s212 + $0x58] sm:$0xff]
        %v979 = vld [vmem:[%s212 + $0x60] sm:$0xff]
        %v980 = vld [vmem:[%s212 + $0x68] sm:$0xff]
        %v981 = vld [vmem:[%s212 + $0x70] sm:$0xff]
        %v982 = vld [vmem:[%s212 + $0x78] sm:$0xff]
        %v983 = vld [vmem:[%s212 + $0x80] sm:$0xff]
        %v984 = vld [vmem:[%s212 + $0x88] sm:$0xff]
        %v985 = vld [vmem:[%s212 + $0x90] sm:$0xff]
        %v986 = vld [vmem:[%s212 + $0x98] sm:$0xff]
        %v987 = vld [vmem:[%s212 + $0xa0] sm:$0xff]
        %v988 = vld [vmem:[%s212 + $0xa8] sm:$0xff]
        %v989 = vld [vmem:[%s212 + $0xb0] sm:$0xff]
        %v990 = vld [vmem:[%s212 + $0xb8] sm:$0xff]
        %v991 = vld [vmem:[%s212 + $0xc0] sm:$0xff]
        %v992 = vld [vmem:[%s212 + $0xc8] sm:$0xff]
        %v993 = vld [vmem:[%s212 + $0xd0] sm:$0xff]
        %v994 = vld [vmem:[%s212 + $0xd8] sm:$0xff]
        %v995 = vld [vmem:[%s212 + $0xe0] sm:$0xff]
        %v996 = vld [vmem:[%s212 + $0xe8] sm:$0xff]
        %v997 = vld [vmem:[%s212 + $0xf0] sm:$0xff]
        %v998 = vld [vmem:[%s212 + $0xf8] sm:$0xff]
        %v999 = vld [vmem:[%s212 + $0x100] sm:$0xff]
        %v1000 = vld [vmem:[%s212 + $0x108] sm:$0xff]
        %v1001 = vld [vmem:[%s212 + $0x110] sm:$0xff]
        %v1002 = vld [vmem:[%s212 + $0x118] sm:$0xff]
        %v1003 = vld [vmem:[%s212 + $0x120] sm:$0xff]
        %v1004 = vld [vmem:[%s212 + $0x128] sm:$0xff]
        %v1005 = vld [vmem:[%s212 + $0x130] sm:$0xff]
        %v1006 = vld [vmem:[%s212 + $0x138] sm:$0xff]
        %v1007 = vld [vmem:[%s212 + $0x140] sm:$0xff]
        %v1008 = vld [vmem:[%s212 + $0x148] sm:$0xff]
        %v1009 = vld [vmem:[%s212 + $0x150] sm:$0xff]
        %v1010 = vld [vmem:[%s212 + $0x158] sm:$0xff]
        %v1011 = vld [vmem:[%s212 + $0x160] sm:$0xff]
        %v1012 = vld [vmem:[%s212 + $0x168] sm:$0xff]
        %v1013 = vld [vmem:[%s212 + $0x170] sm:$0xff]
        %v1014 = vld [vmem:[%s212 + $0x178] sm:$0xff]
        %v1015 = vld [vmem:[%s212 + $0x180] sm:$0xff]
        %v1016 = vld [vmem:[%s212 + $0x188] sm:$0xff]
        %v1017 = vld [vmem:[%s212 + $0x190] sm:$0xff]
        %v1018 = vld [vmem:[%s212 + $0x198] sm:$0xff]
        %v1019 = vld [vmem:[%s212 + $0x1a0] sm:$0xff]
        %v1020 = vld [vmem:[%s212 + $0x1a8] sm:$0xff]
        %v1021 = vld [vmem:[%s212 + $0x1b0] sm:$0xff]
        %v1022 = vld [vmem:[%s212 + $0x1b8] sm:$0xff]
        %v1023 = vld [vmem:[%s212 + $0x1c0] sm:$0xff]
        %v1024 = vld [vmem:[%s212 + $0x1c8] sm:$0xff]
        %v1025 = vld [vmem:[%s212 + $0x1d0] sm:$0xff]
        %v1026 = vld [vmem:[%s212 + $0x1d8] sm:$0xff]
        %v1027 = vld [vmem:[%s212 + $0x1e0] sm:$0xff]
        %v1028 = vld [vmem:[%s212 + $0x1e8] sm:$0xff]
        %v1029 = vld [vmem:[%s212 + $0x1f0] sm:$0xff]
        %v1030 = vld [vmem:[%s212 + $0x1f8] sm:$0xff]
        %v1031 = vlaneseq
        %v1032 = vshrl.u32 %v1031, 7
        %v1033 = vsub.s32 3, %v1032
        %v1034 = vrot.slane %v201, %v1033
        %v1035 = vmul.f32 %v1034, %v967
        %v1036 = vmul.f32 %v1034, %v968
        %v1037 = vmul.f32 %v1034, %v969
        %v1038 = vmul.f32 %v1034, %v971
        %v1039 = vmul.f32 %v1034, %v972
        %v1040 = vmul.f32 %v1034, %v973
        %v1041 = vmul.f32 %v1034, %v975
        %v1042 = vmul.f32 %v1034, %v976
        %v1043 = vmul.f32 %v1034, %v977
        %v1044 = vmul.f32 %v1034, %v979
        %v1045 = vmul.f32 %v1034, %v980
        %v1046 = vmul.f32 %v1034, %v981
        %v1047 = vmul.f32 %v1034, %v983
        %v1048 = vmul.f32 %v1034, %v984
        %v1049 = vmul.f32 %v1034, %v985
        %v1050 = vmul.f32 %v1034, %v987
        %v1051 = vmul.f32 %v1034, %v988
        %v1052 = vmul.f32 %v1034, %v989
        %v1053 = vmul.f32 %v1034, %v991
        %v1054 = vmul.f32 %v1034, %v992
        %v1055 = vmul.f32 %v1034, %v993
        %v1056 = vmul.f32 %v1034, %v995
        %v1057 = vmul.f32 %v1034, %v996
        %v1058 = vmul.f32 %v1034, %v997
        %v1059 = vmul.f32 %v1034, %v999
        %v1060 = vmul.f32 %v1034, %v1000
        %v1061 = vmul.f32 %v1034, %v1001
        %v1062 = vmul.f32 %v1034, %v1003
        %v1063 = vmul.f32 %v1034, %v1004
        %v1064 = vmul.f32 %v1034, %v1005
        %v1065 = vmul.f32 %v1034, %v1007
        %v1066 = vmul.f32 %v1034, %v1008
        %v1067 = vmul.f32 %v1034, %v1009
        %v1068 = vmul.f32 %v1034, %v1011
        %v1069 = vmul.f32 %v1034, %v1012
        %v1070 = vmul.f32 %v1034, %v1013
        %v1071 = vmul.f32 %v1034, %v1015
        %v1072 = vmul.f32 %v1034, %v1016
        %v1073 = vmul.f32 %v1034, %v1017
        %v1074 = vmul.f32 %v1034, %v1019
        %v1075 = vmul.f32 %v1034, %v1020
        %v1076 = vmul.f32 %v1034, %v1021
        %v1077 = vmul.f32 %v1034, %v1023
        %v1078 = vmul.f32 %v1034, %v1024
        %v1079 = vmul.f32 %v1034, %v1025
        %v1080 = vmul.f32 %v1034, %v1027
        %v1081 = vmul.f32 %v1034, %v1028
        %v1082 = vmul.f32 %v1034, %v1029
        %v1083 = vadd.f32 %v919, %v1035
        %v1084 = vadd.f32 %v920, %v1036
        %v1085 = vadd.f32 %v921, %v1037
        %v1086 = vadd.f32 %v922, %v1038
        %v1087 = vadd.f32 %v923, %v1039
        %v1088 = vadd.f32 %v924, %v1040
        %v1089 = vadd.f32 %v925, %v1041
        %v1090 = vadd.f32 %v926, %v1042
        %v1091 = vadd.f32 %v927, %v1043
        %v1092 = vadd.f32 %v928, %v1044
        %v1093 = vadd.f32 %v929, %v1045
        %v1094 = vadd.f32 %v930, %v1046
        %v1095 = vadd.f32 %v931, %v1047
        %v1096 = vadd.f32 %v932, %v1048
        %v1097 = vadd.f32 %v933, %v1049
        %v1098 = vadd.f32 %v934, %v1050
        %v1099 = vadd.f32 %v935, %v1051
        %v1100 = vadd.f32 %v936, %v1052
        %v1101 = vadd.f32 %v937, %v1053
        %v1102 = vadd.f32 %v938, %v1054
        %v1103 = vadd.f32 %v939, %v1055
        %v1104 = vadd.f32 %v940, %v1056
        %v1105 = vadd.f32 %v941, %v1057
        %v1106 = vadd.f32 %v942, %v1058
        %v1107 = vadd.f32 %v943, %v1059
        %v1108 = vadd.f32 %v944, %v1060
        %v1109 = vadd.f32 %v945, %v1061
        %v1110 = vadd.f32 %v946, %v1062
        %v1111 = vadd.f32 %v947, %v1063
        %v1112 = vadd.f32 %v948, %v1064
        %v1113 = vadd.f32 %v949, %v1065
        %v1114 = vadd.f32 %v950, %v1066
        %v1115 = vadd.f32 %v951, %v1067
        %v1116 = vadd.f32 %v952, %v1068
        %v1117 = vadd.f32 %v953, %v1069
        %v1118 = vadd.f32 %v954, %v1070
        %v1119 = vadd.f32 %v955, %v1071
        %v1120 = vadd.f32 %v956, %v1072
        %v1121 = vadd.f32 %v957, %v1073
        %v1122 = vadd.f32 %v958, %v1074
        %v1123 = vadd.f32 %v959, %v1075
        %v1124 = vadd.f32 %v960, %v1076
        %v1125 = vadd.f32 %v961, %v1077
        %v1126 = vadd.f32 %v962, %v1078
        %v1127 = vadd.f32 %v963, %v1079
        %v1128 = vadd.f32 %v964, %v1080
        %v1129 = vadd.f32 %v965, %v1081
        %v1130 = vadd.f32 %v966, %v1082
        %v1131 = vlaneseq
        %v1132 = vshrl.u32 %v1131, 7
        %v1133 = vsub.s32 4, %v1132
        %v1134 = vrot.slane %v201, %v1133
        %v1135 = vmul.f32 %v1134, %v968
        %v1136 = vmul.f32 %v1134, %v969
        %v1137 = vmul.f32 %v1134, %v972
        %v1138 = vmul.f32 %v1134, %v973
        %v1139 = vmul.f32 %v1134, %v976
        %v1140 = vmul.f32 %v1134, %v977
        %v1141 = vmul.f32 %v1134, %v980
        %v1142 = vmul.f32 %v1134, %v981
        %v1143 = vmul.f32 %v1134, %v984
        %v1144 = vmul.f32 %v1134, %v985
        %v1145 = vmul.f32 %v1134, %v988
        %v1146 = vmul.f32 %v1134, %v989
        %v1147 = vmul.f32 %v1134, %v992
        %v1148 = vmul.f32 %v1134, %v993
        %v1149 = vmul.f32 %v1134, %v996
        %v1150 = vmul.f32 %v1134, %v997
        %v1151 = vmul.f32 %v1134, %v1000
        %v1152 = vmul.f32 %v1134, %v1001
        %v1153 = vmul.f32 %v1134, %v1004
        %v1154 = vmul.f32 %v1134, %v1005
        %v1155 = vmul.f32 %v1134, %v1008
        %v1156 = vmul.f32 %v1134, %v1009
        %v1157 = vmul.f32 %v1134, %v1012
        %v1158 = vmul.f32 %v1134, %v1013
        %v1159 = vmul.f32 %v1134, %v1016
        %v1160 = vmul.f32 %v1134, %v1017
        %v1161 = vmul.f32 %v1134, %v1020
        %v1162 = vmul.f32 %v1134, %v1021
        %v1163 = vmul.f32 %v1134, %v1024
        %v1164 = vmul.f32 %v1134, %v1025
        %v1165 = vmul.f32 %v1134, %v1028
        %v1166 = vmul.f32 %v1134, %v1029
        %v1199 = vrot.slane %v1135, 1
        %v1200 = vrot.slane %v1136, 1
        %v1201 = vsel %vm545, %v1199, %v1200
        %v1202 = vrot.slane %v1137, 1
        %v1203 = vrot.slane %v1138, 1
        %v1204 = vsel %vm545, %v1202, %v1203
        %v1205 = vrot.slane %v1139, 1
        %v1206 = vrot.slane %v1140, 1
        %v1207 = vsel %vm545, %v1205, %v1206
        %v1208 = vrot.slane %v1141, 1
        %v1209 = vrot.slane %v1142, 1
        %v1210 = vsel %vm545, %v1208, %v1209
        %v1211 = vrot.slane %v1143, 1
        %v1212 = vrot.slane %v1144, 1
        %v1213 = vsel %vm545, %v1211, %v1212
        %v1214 = vrot.slane %v1145, 1
        %v1215 = vrot.slane %v1146, 1
        %v1216 = vsel %vm545, %v1214, %v1215
        %v1217 = vrot.slane %v1147, 1
        %v1218 = vrot.slane %v1148, 1
        %v1219 = vsel %vm545, %v1217, %v1218
        %v1220 = vrot.slane %v1149, 1
        %v1221 = vrot.slane %v1150, 1
        %v1222 = vsel %vm545, %v1220, %v1221
        %v1223 = vrot.slane %v1151, 1
        %v1224 = vrot.slane %v1152, 1
        %v1225 = vsel %vm545, %v1223, %v1224
        %v1226 = vrot.slane %v1153, 1
        %v1227 = vrot.slane %v1154, 1
        %v1228 = vsel %vm545, %v1226, %v1227
        %v1229 = vrot.slane %v1155, 1
        %v1230 = vrot.slane %v1156, 1
        %v1231 = vsel %vm545, %v1229, %v1230
        %v1232 = vrot.slane %v1157, 1
        %v1233 = vrot.slane %v1158, 1
        %v1234 = vsel %vm545, %v1232, %v1233
        %v1235 = vrot.slane %v1159, 1
        %v1236 = vrot.slane %v1160, 1
        %v1237 = vsel %vm545, %v1235, %v1236
        %v1238 = vrot.slane %v1161, 1
        %v1239 = vrot.slane %v1162, 1
        %v1240 = vsel %vm545, %v1238, %v1239
        %v1241 = vrot.slane %v1163, 1
        %v1242 = vrot.slane %v1164, 1
        %v1243 = vsel %vm545, %v1241, %v1242
        %v1244 = vrot.slane %v1165, 1
        %v1245 = vrot.slane %v1166, 1
        %v1246 = vsel %vm545, %v1244, %v1245
        %v1295 = vadd.f32 %v1083, %v1199
        %v1296 = vadd.f32 %v1084, %v1201
        %v1297 = vadd.f32 %v1085, %v1200
        %v1298 = vadd.f32 %v1086, %v1202
        %v1299 = vadd.f32 %v1087, %v1204
        %v1300 = vadd.f32 %v1088, %v1203
        %v1301 = vadd.f32 %v1089, %v1205
        %v1302 = vadd.f32 %v1090, %v1207
        %v1303 = vadd.f32 %v1091, %v1206
        %v1304 = vadd.f32 %v1092, %v1208
        %v1305 = vadd.f32 %v1093, %v1210
        %v1306 = vadd.f32 %v1094, %v1209
        %v1307 = vadd.f32 %v1095, %v1211
        %v1308 = vadd.f32 %v1096, %v1213
        %v1309 = vadd.f32 %v1097, %v1212
        %v1310 = vadd.f32 %v1098, %v1214
        %v1311 = vadd.f32 %v1099, %v1216
        %v1312 = vadd.f32 %v1100, %v1215
        %v1313 = vadd.f32 %v1101, %v1217
        %v1314 = vadd.f32 %v1102, %v1219
        %v1315 = vadd.f32 %v1103, %v1218
        %v1316 = vadd.f32 %v1104, %v1220
        %v1317 = vadd.f32 %v1105, %v1222
        %v1318 = vadd.f32 %v1106, %v1221
        %v1319 = vadd.f32 %v1107, %v1223
        %v1320 = vadd.f32 %v1108, %v1225
        %v1321 = vadd.f32 %v1109, %v1224
        %v1322 = vadd.f32 %v1110, %v1226
        %v1323 = vadd.f32 %v1111, %v1228
        %v1324 = vadd.f32 %v1112, %v1227
        %v1325 = vadd.f32 %v1113, %v1229
        %v1326 = vadd.f32 %v1114, %v1231
        %v1327 = vadd.f32 %v1115, %v1230
        %v1328 = vadd.f32 %v1116, %v1232
        %v1329 = vadd.f32 %v1117, %v1234
        %v1330 = vadd.f32 %v1118, %v1233
        %v1331 = vadd.f32 %v1119, %v1235
        %v1332 = vadd.f32 %v1120, %v1237
        %v1333 = vadd.f32 %v1121, %v1236
        %v1334 = vadd.f32 %v1122, %v1238
        %v1335 = vadd.f32 %v1123, %v1240
        %v1336 = vadd.f32 %v1124, %v1239
        %v1337 = vadd.f32 %v1125, %v1241
        %v1338 = vadd.f32 %v1126, %v1243
        %v1339 = vadd.f32 %v1127, %v1242
        %v1340 = vadd.f32 %v1128, %v1244
        %v1341 = vadd.f32 %v1129, %v1246
        %v1342 = vadd.f32 %v1130, %v1245
        %v1343 = vlaneseq
        %v1344 = vshrl.u32 %v1343, 7
        %v1345 = vsub.s32 5, %v1344
        %v1346 = vrot.slane %v201, %v1345
        %v1347 = vmul.f32 %v1346, %v968
        %v1348 = vmul.f32 %v1346, %v969
        %v1349 = vmul.f32 %v1346, %v970
        %v1350 = vmul.f32 %v1346, %v972
        %v1351 = vmul.f32 %v1346, %v973
        %v1352 = vmul.f32 %v1346, %v974
        %v1353 = vmul.f32 %v1346, %v976
        %v1354 = vmul.f32 %v1346, %v977
        %v1355 = vmul.f32 %v1346, %v978
        %v1356 = vmul.f32 %v1346, %v980
        %v1357 = vmul.f32 %v1346, %v981
        %v1358 = vmul.f32 %v1346, %v982
        %v1359 = vmul.f32 %v1346, %v984
        %v1360 = vmul.f32 %v1346, %v985
        %v1361 = vmul.f32 %v1346, %v986
        %v1362 = vmul.f32 %v1346, %v988
        %v1363 = vmul.f32 %v1346, %v989
        %v1364 = vmul.f32 %v1346, %v990
        %v1365 = vmul.f32 %v1346, %v992
        %v1366 = vmul.f32 %v1346, %v993
        %v1367 = vmul.f32 %v1346, %v994
        %v1368 = vmul.f32 %v1346, %v996
        %v1369 = vmul.f32 %v1346, %v997
        %v1370 = vmul.f32 %v1346, %v998
        %v1371 = vmul.f32 %v1346, %v1000
        %v1372 = vmul.f32 %v1346, %v1001
        %v1373 = vmul.f32 %v1346, %v1002
        %v1374 = vmul.f32 %v1346, %v1004
        %v1375 = vmul.f32 %v1346, %v1005
        %v1376 = vmul.f32 %v1346, %v1006
        %v1377 = vmul.f32 %v1346, %v1008
        %v1378 = vmul.f32 %v1346, %v1009
        %v1379 = vmul.f32 %v1346, %v1010
        %v1380 = vmul.f32 %v1346, %v1012
        %v1381 = vmul.f32 %v1346, %v1013
        %v1382 = vmul.f32 %v1346, %v1014
        %v1383 = vmul.f32 %v1346, %v1016
        %v1384 = vmul.f32 %v1346, %v1017
        %v1385 = vmul.f32 %v1346, %v1018
        %v1386 = vmul.f32 %v1346, %v1020
        %v1387 = vmul.f32 %v1346, %v1021
        %v1388 = vmul.f32 %v1346, %v1022
        %v1389 = vmul.f32 %v1346, %v1024
        %v1390 = vmul.f32 %v1346, %v1025
        %v1391 = vmul.f32 %v1346, %v1026
        %v1392 = vmul.f32 %v1346, %v1028
        %v1393 = vmul.f32 %v1346, %v1029
        %v1394 = vmul.f32 %v1346, %v1030
        %v1443 = vrot.slane %v1347, 2
        %v1444 = vrot.slane %v1348, 2
        %v1445 = vsel %vm790, %v1443, %v1444
        %v1446 = vrot.slane %v1349, 2
        %v1447 = vsel %vm790, %v1444, %v1446
        %v1448 = vrot.slane %v1350, 2
        %v1449 = vrot.slane %v1351, 2
        %v1450 = vsel %vm790, %v1448, %v1449
        %v1451 = vrot.slane %v1352, 2
        %v1452 = vsel %vm790, %v1449, %v1451
        %v1453 = vrot.slane %v1353, 2
        %v1454 = vrot.slane %v1354, 2
        %v1455 = vsel %vm790, %v1453, %v1454
        %v1456 = vrot.slane %v1355, 2
        %v1457 = vsel %vm790, %v1454, %v1456
        %v1458 = vrot.slane %v1356, 2
        %v1459 = vrot.slane %v1357, 2
        %v1460 = vsel %vm790, %v1458, %v1459
        %v1461 = vrot.slane %v1358, 2
        %v1462 = vsel %vm790, %v1459, %v1461
        %v1463 = vrot.slane %v1359, 2
        %v1464 = vrot.slane %v1360, 2
        %v1465 = vsel %vm790, %v1463, %v1464
        %v1466 = vrot.slane %v1361, 2
        %v1467 = vsel %vm790, %v1464, %v1466
        %v1468 = vrot.slane %v1362, 2
        %v1469 = vrot.slane %v1363, 2
        %v1470 = vsel %vm790, %v1468, %v1469
        %v1471 = vrot.slane %v1364, 2
        %v1472 = vsel %vm790, %v1469, %v1471
        %v1473 = vrot.slane %v1365, 2
        %v1474 = vrot.slane %v1366, 2
        %v1475 = vsel %vm790, %v1473, %v1474
        %v1476 = vrot.slane %v1367, 2
        %v1477 = vsel %vm790, %v1474, %v1476
        %v1478 = vrot.slane %v1368, 2
        %v1479 = vrot.slane %v1369, 2
        %v1480 = vsel %vm790, %v1478, %v1479
        %v1481 = vrot.slane %v1370, 2
        %v1482 = vsel %vm790, %v1479, %v1481
        %v1483 = vrot.slane %v1371, 2
        %v1484 = vrot.slane %v1372, 2
        %v1485 = vsel %vm790, %v1483, %v1484
        %v1486 = vrot.slane %v1373, 2
        %v1487 = vsel %vm790, %v1484, %v1486
        %v1488 = vrot.slane %v1374, 2
        %v1489 = vrot.slane %v1375, 2
        %v1490 = vsel %vm790, %v1488, %v1489
        %v1491 = vrot.slane %v1376, 2
        %v1492 = vsel %vm790, %v1489, %v1491
        %v1493 = vrot.slane %v1377, 2
        %v1494 = vrot.slane %v1378, 2
        %v1495 = vsel %vm790, %v1493, %v1494
        %v1496 = vrot.slane %v1379, 2
        %v1497 = vsel %vm790, %v1494, %v1496
        %v1498 = vrot.slane %v1380, 2
        %v1499 = vrot.slane %v1381, 2
        %v1500 = vsel %vm790, %v1498, %v1499
        %v1501 = vrot.slane %v1382, 2
        %v1502 = vsel %vm790, %v1499, %v1501
        %v1503 = vrot.slane %v1383, 2
        %v1504 = vrot.slane %v1384, 2
        %v1505 = vsel %vm790, %v1503, %v1504
        %v1506 = vrot.slane %v1385, 2
        %v1507 = vsel %vm790, %v1504, %v1506
        %v1508 = vrot.slane %v1386, 2
        %v1509 = vrot.slane %v1387, 2
        %v1510 = vsel %vm790, %v1508, %v1509
        %v1511 = vrot.slane %v1388, 2
        %v1512 = vsel %vm790, %v1509, %v1511
        %v1513 = vrot.slane %v1389, 2
        %v1514 = vrot.slane %v1390, 2
        %v1515 = vsel %vm790, %v1513, %v1514
        %v1516 = vrot.slane %v1391, 2
        %v1517 = vsel %vm790, %v1514, %v1516
        %v1518 = vrot.slane %v1392, 2
        %v1519 = vrot.slane %v1393, 2
        %v1520 = vsel %vm790, %v1518, %v1519
        %v1521 = vrot.slane %v1394, 2
        %v1522 = vsel %vm790, %v1519, %v1521
        %v1571 = vadd.f32 %v1295, %v1443
        %v1572 = vadd.f32 %v1296, %v1445
        %v1573 = vadd.f32 %v1297, %v1447
        %v1574 = vadd.f32 %v1298, %v1448
        %v1575 = vadd.f32 %v1299, %v1450
        %v1576 = vadd.f32 %v1300, %v1452
        %v1577 = vadd.f32 %v1301, %v1453
        %v1578 = vadd.f32 %v1302, %v1455
        %v1579 = vadd.f32 %v1303, %v1457
        %v1580 = vadd.f32 %v1304, %v1458
        %v1581 = vadd.f32 %v1305, %v1460
        %v1582 = vadd.f32 %v1306, %v1462
        %v1583 = vadd.f32 %v1307, %v1463
        %v1584 = vadd.f32 %v1308, %v1465
        %v1585 = vadd.f32 %v1309, %v1467
        %v1586 = vadd.f32 %v1310, %v1468
        %v1587 = vadd.f32 %v1311, %v1470
        %v1588 = vadd.f32 %v1312, %v1472
        %v1589 = vadd.f32 %v1313, %v1473
        %v1590 = vadd.f32 %v1314, %v1475
        %v1591 = vadd.f32 %v1315, %v1477
        %v1592 = vadd.f32 %v1316, %v1478
        %v1593 = vadd.f32 %v1317, %v1480
        %v1594 = vadd.f32 %v1318, %v1482
        %v1595 = vadd.f32 %v1319, %v1483
        %v1596 = vadd.f32 %v1320, %v1485
        %v1597 = vadd.f32 %v1321, %v1487
        %v1598 = vadd.f32 %v1322, %v1488
        %v1599 = vadd.f32 %v1323, %v1490
        %v1600 = vadd.f32 %v1324, %v1492
        %v1601 = vadd.f32 %v1325, %v1493
        %v1602 = vadd.f32 %v1326, %v1495
        %v1603 = vadd.f32 %v1327, %v1497
        %v1604 = vadd.f32 %v1328, %v1498
        %v1605 = vadd.f32 %v1329, %v1500
        %v1606 = vadd.f32 %v1330, %v1502
        %v1607 = vadd.f32 %v1331, %v1503
        %v1608 = vadd.f32 %v1332, %v1505
        %v1609 = vadd.f32 %v1333, %v1507
        %v1610 = vadd.f32 %v1334, %v1508
        %v1611 = vadd.f32 %v1335, %v1510
        %v1612 = vadd.f32 %v1336, %v1512
        %v1613 = vadd.f32 %v1337, %v1513
        %v1614 = vadd.f32 %v1338, %v1515
        %v1615 = vadd.f32 %v1339, %v1517
        %v1616 = vadd.f32 %v1340, %v1518
        %v1617 = vadd.f32 %v1341, %v1520
        %v1618 = vadd.f32 %v1342, %v1522
        %s1619 = scalar_lea.vmem [#allocation2], 64
        %v1620 = vld [vmem:[%s1619] sm:$0xff]
        %v1621 = vld [vmem:[%s1619 + $0x8] sm:$0xff]
        %v1622 = vld [vmem:[%s1619 + $0x10] sm:$0xff]
        %v1623 = vld [vmem:[%s1619 + $0x18] sm:$0xff]
        %v1624 = vld [vmem:[%s1619 + $0x20] sm:$0xff]
        %v1625 = vld [vmem:[%s1619 + $0x28] sm:$0xff]
        %v1626 = vld [vmem:[%s1619 + $0x30] sm:$0xff]
        %v1627 = vld [vmem:[%s1619 + $0x38] sm:$0xff]
        %v1628 = vld [vmem:[%s1619 + $0x40] sm:$0xff]
        %v1629 = vld [vmem:[%s1619 + $0x48] sm:$0xff]
        %v1630 = vld [vmem:[%s1619 + $0x50] sm:$0xff]
        %v1631 = vld [vmem:[%s1619 + $0x58] sm:$0xff]
        %v1632 = vld [vmem:[%s1619 + $0x60] sm:$0xff]
        %v1633 = vld [vmem:[%s1619 + $0x68] sm:$0xff]
        %v1634 = vld [vmem:[%s1619 + $0x70] sm:$0xff]
        %v1635 = vld [vmem:[%s1619 + $0x78] sm:$0xff]
        %v1636 = vld [vmem:[%s1619 + $0x80] sm:$0xff]
        %v1637 = vld [vmem:[%s1619 + $0x88] sm:$0xff]
        %v1638 = vld [vmem:[%s1619 + $0x90] sm:$0xff]
        %v1639 = vld [vmem:[%s1619 + $0x98] sm:$0xff]
        %v1640 = vld [vmem:[%s1619 + $0xa0] sm:$0xff]
        %v1641 = vld [vmem:[%s1619 + $0xa8] sm:$0xff]
        %v1642 = vld [vmem:[%s1619 + $0xb0] sm:$0xff]
        %v1643 = vld [vmem:[%s1619 + $0xb8] sm:$0xff]
        %v1644 = vld [vmem:[%s1619 + $0xc0] sm:$0xff]
        %v1645 = vld [vmem:[%s1619 + $0xc8] sm:$0xff]
        %v1646 = vld [vmem:[%s1619 + $0xd0] sm:$0xff]
        %v1647 = vld [vmem:[%s1619 + $0xd8] sm:$0xff]
        %v1648 = vld [vmem:[%s1619 + $0xe0] sm:$0xff]
        %v1649 = vld [vmem:[%s1619 + $0xe8] sm:$0xff]
        %v1650 = vld [vmem:[%s1619 + $0xf0] sm:$0xff]
        %v1651 = vld [vmem:[%s1619 + $0xf8] sm:$0xff]
        %v1652 = vld [vmem:[%s1619 + $0x100] sm:$0xff]
        %v1653 = vld [vmem:[%s1619 + $0x108] sm:$0xff]
        %v1654 = vld [vmem:[%s1619 + $0x110] sm:$0xff]
        %v1655 = vld [vmem:[%s1619 + $0x118] sm:$0xff]
        %v1656 = vld [vmem:[%s1619 + $0x120] sm:$0xff]
        %v1657 = vld [vmem:[%s1619 + $0x128] sm:$0xff]
        %v1658 = vld [vmem:[%s1619 + $0x130] sm:$0xff]
        %v1659 = vld [vmem:[%s1619 + $0x138] sm:$0xff]
        %v1660 = vld [vmem:[%s1619 + $0x140] sm:$0xff]
        %v1661 = vld [vmem:[%s1619 + $0x148] sm:$0xff]
        %v1662 = vld [vmem:[%s1619 + $0x150] sm:$0xff]
        %v1663 = vld [vmem:[%s1619 + $0x158] sm:$0xff]
        %v1664 = vld [vmem:[%s1619 + $0x160] sm:$0xff]
        %v1665 = vld [vmem:[%s1619 + $0x168] sm:$0xff]
        %v1666 = vld [vmem:[%s1619 + $0x170] sm:$0xff]
        %v1667 = vld [vmem:[%s1619 + $0x178] sm:$0xff]
        %v1668 = vld [vmem:[%s1619 + $0x180] sm:$0xff]
        %v1669 = vld [vmem:[%s1619 + $0x188] sm:$0xff]
        %v1670 = vld [vmem:[%s1619 + $0x190] sm:$0xff]
        %v1671 = vld [vmem:[%s1619 + $0x198] sm:$0xff]
        %v1672 = vld [vmem:[%s1619 + $0x1a0] sm:$0xff]
        %v1673 = vld [vmem:[%s1619 + $0x1a8] sm:$0xff]
        %v1674 = vld [vmem:[%s1619 + $0x1b0] sm:$0xff]
        %v1675 = vld [vmem:[%s1619 + $0x1b8] sm:$0xff]
        %v1676 = vld [vmem:[%s1619 + $0x1c0] sm:$0xff]
        %v1677 = vld [vmem:[%s1619 + $0x1c8] sm:$0xff]
        %v1678 = vld [vmem:[%s1619 + $0x1d0] sm:$0xff]
        %v1679 = vld [vmem:[%s1619 + $0x1d8] sm:$0xff]
        %v1680 = vld [vmem:[%s1619 + $0x1e0] sm:$0xff]
        %v1681 = vld [vmem:[%s1619 + $0x1e8] sm:$0xff]
        %v1682 = vld [vmem:[%s1619 + $0x1f0] sm:$0xff]
        %v1683 = vld [vmem:[%s1619 + $0x1f8] sm:$0xff]
        %v1684 = vlaneseq
        %v1685 = vshrl.u32 %v1684, 7
        %v1686 = vsub.s32 6, %v1685
        %v1687 = vrot.slane %v201, %v1686
        %v1688 = vmul.f32 %v1687, %v1620
        %v1689 = vmul.f32 %v1687, %v1621
        %v1690 = vmul.f32 %v1687, %v1622
        %v1691 = vmul.f32 %v1687, %v1624
        %v1692 = vmul.f32 %v1687, %v1625
        %v1693 = vmul.f32 %v1687, %v1626
        %v1694 = vmul.f32 %v1687, %v1628
        %v1695 = vmul.f32 %v1687, %v1629
        %v1696 = vmul.f32 %v1687, %v1630
        %v1697 = vmul.f32 %v1687, %v1632
        %v1698 = vmul.f32 %v1687, %v1633
        %v1699 = vmul.f32 %v1687, %v1634
        %v1700 = vmul.f32 %v1687, %v1636
        %v1701 = vmul.f32 %v1687, %v1637
        %v1702 = vmul.f32 %v1687, %v1638
        %v1703 = vmul.f32 %v1687, %v1640
        %v1704 = vmul.f32 %v1687, %v1641
        %v1705 = vmul.f32 %v1687, %v1642
        %v1706 = vmul.f32 %v1687, %v1644
        %v1707 = vmul.f32 %v1687, %v1645
        %v1708 = vmul.f32 %v1687, %v1646
        %v1709 = vmul.f32 %v1687, %v1648
        %v1710 = vmul.f32 %v1687, %v1649
        %v1711 = vmul.f32 %v1687, %v1650
        %v1712 = vmul.f32 %v1687, %v1652
        %v1713 = vmul.f32 %v1687, %v1653
        %v1714 = vmul.f32 %v1687, %v1654
        %v1715 = vmul.f32 %v1687, %v1656
        %v1716 = vmul.f32 %v1687, %v1657
        %v1717 = vmul.f32 %v1687, %v1658
        %v1718 = vmul.f32 %v1687, %v1660
        %v1719 = vmul.f32 %v1687, %v1661
        %v1720 = vmul.f32 %v1687, %v1662
        %v1721 = vmul.f32 %v1687, %v1664
        %v1722 = vmul.f32 %v1687, %v1665
        %v1723 = vmul.f32 %v1687, %v1666
        %v1724 = vmul.f32 %v1687, %v1668
        %v1725 = vmul.f32 %v1687, %v1669
        %v1726 = vmul.f32 %v1687, %v1670
        %v1727 = vmul.f32 %v1687, %v1672
        %v1728 = vmul.f32 %v1687, %v1673
        %v1729 = vmul.f32 %v1687, %v1674
        %v1730 = vmul.f32 %v1687, %v1676
        %v1731 = vmul.f32 %v1687, %v1677
        %v1732 = vmul.f32 %v1687, %v1678
        %v1733 = vmul.f32 %v1687, %v1680
        %v1734 = vmul.f32 %v1687, %v1681
        %v1735 = vmul.f32 %v1687, %v1682
        %v1736 = vadd.f32 %v1571, %v1688
        %v1737 = vadd.f32 %v1572, %v1689
        %v1738 = vadd.f32 %v1573, %v1690
        %v1739 = vadd.f32 %v1574, %v1691
        %v1740 = vadd.f32 %v1575, %v1692
        %v1741 = vadd.f32 %v1576, %v1693
        %v1742 = vadd.f32 %v1577, %v1694
        %v1743 = vadd.f32 %v1578, %v1695
        %v1744 = vadd.f32 %v1579, %v1696
        %v1745 = vadd.f32 %v1580, %v1697
        %v1746 = vadd.f32 %v1581, %v1698
        %v1747 = vadd.f32 %v1582, %v1699
        %v1748 = vadd.f32 %v1583, %v1700
        %v1749 = vadd.f32 %v1584, %v1701
        %v1750 = vadd.f32 %v1585, %v1702
        %v1751 = vadd.f32 %v1586, %v1703
        %v1752 = vadd.f32 %v1587, %v1704
        %v1753 = vadd.f32 %v1588, %v1705
        %v1754 = vadd.f32 %v1589, %v1706
        %v1755 = vadd.f32 %v1590, %v1707
        %v1756 = vadd.f32 %v1591, %v1708
        %v1757 = vadd.f32 %v1592, %v1709
        %v1758 = vadd.f32 %v1593, %v1710
        %v1759 = vadd.f32 %v1594, %v1711
        %v1760 = vadd.f32 %v1595, %v1712
        %v1761 = vadd.f32 %v1596, %v1713
        %v1762 = vadd.f32 %v1597, %v1714
        %v1763 = vadd.f32 %v1598, %v1715
        %v1764 = vadd.f32 %v1599, %v1716
        %v1765 = vadd.f32 %v1600, %v1717
        %v1766 = vadd.f32 %v1601, %v1718
        %v1767 = vadd.f32 %v1602, %v1719
        %v1768 = vadd.f32 %v1603, %v1720
        %v1769 = vadd.f32 %v1604, %v1721
        %v1770 = vadd.f32 %v1605, %v1722
        %v1771 = vadd.f32 %v1606, %v1723
        %v1772 = vadd.f32 %v1607, %v1724
        %v1773 = vadd.f32 %v1608, %v1725
        %v1774 = vadd.f32 %v1609, %v1726
        %v1775 = vadd.f32 %v1610, %v1727
        %v1776 = vadd.f32 %v1611, %v1728
        %v1777 = vadd.f32 %v1612, %v1729
        %v1778 = vadd.f32 %v1613, %v1730
        %v1779 = vadd.f32 %v1614, %v1731
        %v1780 = vadd.f32 %v1615, %v1732
        %v1781 = vadd.f32 %v1616, %v1733
        %v1782 = vadd.f32 %v1617, %v1734
        %v1783 = vadd.f32 %v1618, %v1735
        %v1784 = vlaneseq
        %v1785 = vshrl.u32 %v1784, 7
        %v1786 = vsub.s32 7, %v1785
        %v1787 = vrot.slane %v201, %v1786
        %v1788 = vmul.f32 %v1787, %v1621
        %v1789 = vmul.f32 %v1787, %v1622
        %v1790 = vmul.f32 %v1787, %v1625
        %v1791 = vmul.f32 %v1787, %v1626
        %v1792 = vmul.f32 %v1787, %v1629
        %v1793 = vmul.f32 %v1787, %v1630
        %v1794 = vmul.f32 %v1787, %v1633
        %v1795 = vmul.f32 %v1787, %v1634
        %v1796 = vmul.f32 %v1787, %v1637
        %v1797 = vmul.f32 %v1787, %v1638
        %v1798 = vmul.f32 %v1787, %v1641
        %v1799 = vmul.f32 %v1787, %v1642
        %v1800 = vmul.f32 %v1787, %v1645
        %v1801 = vmul.f32 %v1787, %v1646
        %v1802 = vmul.f32 %v1787, %v1649
        %v1803 = vmul.f32 %v1787, %v1650
        %v1804 = vmul.f32 %v1787, %v1653
        %v1805 = vmul.f32 %v1787, %v1654
        %v1806 = vmul.f32 %v1787, %v1657
        %v1807 = vmul.f32 %v1787, %v1658
        %v1808 = vmul.f32 %v1787, %v1661
        %v1809 = vmul.f32 %v1787, %v1662
        %v1810 = vmul.f32 %v1787, %v1665
        %v1811 = vmul.f32 %v1787, %v1666
        %v1812 = vmul.f32 %v1787, %v1669
        %v1813 = vmul.f32 %v1787, %v1670
        %v1814 = vmul.f32 %v1787, %v1673
        %v1815 = vmul.f32 %v1787, %v1674
        %v1816 = vmul.f32 %v1787, %v1677
        %v1817 = vmul.f32 %v1787, %v1678
        %v1818 = vmul.f32 %v1787, %v1681
        %v1819 = vmul.f32 %v1787, %v1682
        %v1852 = vrot.slane %v1788, 1
        %v1853 = vrot.slane %v1789, 1
        %v1854 = vsel %vm545, %v1852, %v1853
        %v1855 = vrot.slane %v1790, 1
        %v1856 = vrot.slane %v1791, 1
        %v1857 = vsel %vm545, %v1855, %v1856
        %v1858 = vrot.slane %v1792, 1
        %v1859 = vrot.slane %v1793, 1
        %v1860 = vsel %vm545, %v1858, %v1859
        %v1861 = vrot.slane %v1794, 1
        %v1862 = vrot.slane %v1795, 1
        %v1863 = vsel %vm545, %v1861, %v1862
        %v1864 = vrot.slane %v1796, 1
        %v1865 = vrot.slane %v1797, 1
        %v1866 = vsel %vm545, %v1864, %v1865
        %v1867 = vrot.slane %v1798, 1
        %v1868 = vrot.slane %v1799, 1
        %v1869 = vsel %vm545, %v1867, %v1868
        %v1870 = vrot.slane %v1800, 1
        %v1871 = vrot.slane %v1801, 1
        %v1872 = vsel %vm545, %v1870, %v1871
        %v1873 = vrot.slane %v1802, 1
        %v1874 = vrot.slane %v1803, 1
        %v1875 = vsel %vm545, %v1873, %v1874
        %v1876 = vrot.slane %v1804, 1
        %v1877 = vrot.slane %v1805, 1
        %v1878 = vsel %vm545, %v1876, %v1877
        %v1879 = vrot.slane %v1806, 1
        %v1880 = vrot.slane %v1807, 1
        %v1881 = vsel %vm545, %v1879, %v1880
        %v1882 = vrot.slane %v1808, 1
        %v1883 = vrot.slane %v1809, 1
        %v1884 = vsel %vm545, %v1882, %v1883
        %v1885 = vrot.slane %v1810, 1
        %v1886 = vrot.slane %v1811, 1
        %v1887 = vsel %vm545, %v1885, %v1886
        %v1888 = vrot.slane %v1812, 1
        %v1889 = vrot.slane %v1813, 1
        %v1890 = vsel %vm545, %v1888, %v1889
        %v1891 = vrot.slane %v1814, 1
        %v1892 = vrot.slane %v1815, 1
        %v1893 = vsel %vm545, %v1891, %v1892
        %v1894 = vrot.slane %v1816, 1
        %v1895 = vrot.slane %v1817, 1
        %v1896 = vsel %vm545, %v1894, %v1895
        %v1897 = vrot.slane %v1818, 1
        %v1898 = vrot.slane %v1819, 1
        %v1899 = vsel %vm545, %v1897, %v1898
        %v1948 = vadd.f32 %v1736, %v1852
        %v1949 = vadd.f32 %v1737, %v1854
        %v1950 = vadd.f32 %v1738, %v1853
        %v1951 = vadd.f32 %v1739, %v1855
        %v1952 = vadd.f32 %v1740, %v1857
        %v1953 = vadd.f32 %v1741, %v1856
        %v1954 = vadd.f32 %v1742, %v1858
        %v1955 = vadd.f32 %v1743, %v1860
        %v1956 = vadd.f32 %v1744, %v1859
        %v1957 = vadd.f32 %v1745, %v1861
        %v1958 = vadd.f32 %v1746, %v1863
        %v1959 = vadd.f32 %v1747, %v1862
        %v1960 = vadd.f32 %v1748, %v1864
        %v1961 = vadd.f32 %v1749, %v1866
        %v1962 = vadd.f32 %v1750, %v1865
        %v1963 = vadd.f32 %v1751, %v1867
        %v1964 = vadd.f32 %v1752, %v1869
        %v1965 = vadd.f32 %v1753, %v1868
        %v1966 = vadd.f32 %v1754, %v1870
        %v1967 = vadd.f32 %v1755, %v1872
        %v1968 = vadd.f32 %v1756, %v1871
        %v1969 = vadd.f32 %v1757, %v1873
        %v1970 = vadd.f32 %v1758, %v1875
        %v1971 = vadd.f32 %v1759, %v1874
        %v1972 = vadd.f32 %v1760, %v1876
        %v1973 = vadd.f32 %v1761, %v1878
        %v1974 = vadd.f32 %v1762, %v1877
        %v1975 = vadd.f32 %v1763, %v1879
        %v1976 = vadd.f32 %v1764, %v1881
        %v1977 = vadd.f32 %v1765, %v1880
        %v1978 = vadd.f32 %v1766, %v1882
        %v1979 = vadd.f32 %v1767, %v1884
        %v1980 = vadd.f32 %v1768, %v1883
        %v1981 = vadd.f32 %v1769, %v1885
        %v1982 = vadd.f32 %v1770, %v1887
        %v1983 = vadd.f32 %v1771, %v1886
        %v1984 = vadd.f32 %v1772, %v1888
        %v1985 = vadd.f32 %v1773, %v1890
        %v1986 = vadd.f32 %v1774, %v1889
        %v1987 = vadd.f32 %v1775, %v1891
        %v1988 = vadd.f32 %v1776, %v1893
        %v1989 = vadd.f32 %v1777, %v1892
        %v1990 = vadd.f32 %v1778, %v1894
        %v1991 = vadd.f32 %v1779, %v1896
        %v1992 = vadd.f32 %v1780, %v1895
        %v1993 = vadd.f32 %v1781, %v1897
        %v1994 = vadd.f32 %v1782, %v1899
        %v1995 = vadd.f32 %v1783, %v1898
        %v1996 = vlaneseq
        %v1997 = vshrl.u32 %v1996, 7
        %v1998 = vsub.s32 0, %v1997
        %v1999 = vrot.slane %v202, %v1998
        %v2000 = vmul.f32 %v1999, %v1621
        %v2001 = vmul.f32 %v1999, %v1622
        %v2002 = vmul.f32 %v1999, %v1623
        %v2003 = vmul.f32 %v1999, %v1625
        %v2004 = vmul.f32 %v1999, %v1626
        %v2005 = vmul.f32 %v1999, %v1627
        %v2006 = vmul.f32 %v1999, %v1629
        %v2007 = vmul.f32 %v1999, %v1630
        %v2008 = vmul.f32 %v1999, %v1631
        %v2009 = vmul.f32 %v1999, %v1633
        %v2010 = vmul.f32 %v1999, %v1634
        %v2011 = vmul.f32 %v1999, %v1635
        %v2012 = vmul.f32 %v1999, %v1637
        %v2013 = vmul.f32 %v1999, %v1638
        %v2014 = vmul.f32 %v1999, %v1639
        %v2015 = vmul.f32 %v1999, %v1641
        %v2016 = vmul.f32 %v1999, %v1642
        %v2017 = vmul.f32 %v1999, %v1643
        %v2018 = vmul.f32 %v1999, %v1645
        %v2019 = vmul.f32 %v1999, %v1646
        %v2020 = vmul.f32 %v1999, %v1647
        %v2021 = vmul.f32 %v1999, %v1649
        %v2022 = vmul.f32 %v1999, %v1650
        %v2023 = vmul.f32 %v1999, %v1651
        %v2024 = vmul.f32 %v1999, %v1653
        %v2025 = vmul.f32 %v1999, %v1654
        %v2026 = vmul.f32 %v1999, %v1655
        %v2027 = vmul.f32 %v1999, %v1657
        %v2028 = vmul.f32 %v1999, %v1658
        %v2029 = vmul.f32 %v1999, %v1659
        %v2030 = vmul.f32 %v1999, %v1661
        %v2031 = vmul.f32 %v1999, %v1662
        %v2032 = vmul.f32 %v1999, %v1663
        %v2033 = vmul.f32 %v1999, %v1665
        %v2034 = vmul.f32 %v1999, %v1666
        %v2035 = vmul.f32 %v1999, %v1667
        %v2036 = vmul.f32 %v1999, %v1669
        %v2037 = vmul.f32 %v1999, %v1670
        %v2038 = vmul.f32 %v1999, %v1671
        %v2039 = vmul.f32 %v1999, %v1673
        %v2040 = vmul.f32 %v1999, %v1674
        %v2041 = vmul.f32 %v1999, %v1675
        %v2042 = vmul.f32 %v1999, %v1677
        %v2043 = vmul.f32 %v1999, %v1678
        %v2044 = vmul.f32 %v1999, %v1679
        %v2045 = vmul.f32 %v1999, %v1681
        %v2046 = vmul.f32 %v1999, %v1682
        %v2047 = vmul.f32 %v1999, %v1683
        %v2096 = vrot.slane %v2000, 2
        %v2097 = vrot.slane %v2001, 2
        %v2098 = vsel %vm790, %v2096, %v2097
        %v2099 = vrot.slane %v2002, 2
        %v2100 = vsel %vm790, %v2097, %v2099
        %v2101 = vrot.slane %v2003, 2
        %v2102 = vrot.slane %v2004, 2
        %v2103 = vsel %vm790, %v2101, %v2102
        %v2104 = vrot.slane %v2005, 2
        %v2105 = vsel %vm790, %v2102, %v2104
        %v2106 = vrot.slane %v2006, 2
        %v2107 = vrot.slane %v2007, 2
        %v2108 = vsel %vm790, %v2106, %v2107
        %v2109 = vrot.slane %v2008, 2
        %v2110 = vsel %vm790, %v2107, %v2109
        %v2111 = vrot.slane %v2009, 2
        %v2112 = vrot.slane %v2010, 2
        %v2113 = vsel %vm790, %v2111, %v2112
        %v2114 = vrot.slane %v2011, 2
        %v2115 = vsel %vm790, %v2112, %v2114
        %v2116 = vrot.slane %v2012, 2
        %v2117 = vrot.slane %v2013, 2
        %v2118 = vsel %vm790, %v2116, %v2117
        %v2119 = vrot.slane %v2014, 2
        %v2120 = vsel %vm790, %v2117, %v2119
        %v2121 = vrot.slane %v2015, 2
        %v2122 = vrot.slane %v2016, 2
        %v2123 = vsel %vm790, %v2121, %v2122
        %v2124 = vrot.slane %v2017, 2
        %v2125 = vsel %vm790, %v2122, %v2124
        %v2126 = vrot.slane %v2018, 2
        %v2127 = vrot.slane %v2019, 2
        %v2128 = vsel %vm790, %v2126, %v2127
        %v2129 = vrot.slane %v2020, 2
        %v2130 = vsel %vm790, %v2127, %v2129
        %v2131 = vrot.slane %v2021, 2
        %v2132 = vrot.slane %v2022, 2
        %v2133 = vsel %vm790, %v2131, %v2132
        %v2134 = vrot.slane %v2023, 2
        %v2135 = vsel %vm790, %v2132, %v2134
        %v2136 = vrot.slane %v2024, 2
        %v2137 = vrot.slane %v2025, 2
        %v2138 = vsel %vm790, %v2136, %v2137
        %v2139 = vrot.slane %v2026, 2
        %v2140 = vsel %vm790, %v2137, %v2139
        %v2141 = vrot.slane %v2027, 2
        %v2142 = vrot.slane %v2028, 2
        %v2143 = vsel %vm790, %v2141, %v2142
        %v2144 = vrot.slane %v2029, 2
        %v2145 = vsel %vm790, %v2142, %v2144
        %v2146 = vrot.slane %v2030, 2
        %v2147 = vrot.slane %v2031, 2
        %v2148 = vsel %vm790, %v2146, %v2147
        %v2149 = vrot.slane %v2032, 2
        %v2150 = vsel %vm790, %v2147, %v2149
        %v2151 = vrot.slane %v2033, 2
        %v2152 = vrot.slane %v2034, 2
        %v2153 = vsel %vm790, %v2151, %v2152
        %v2154 = vrot.slane %v2035, 2
        %v2155 = vsel %vm790, %v2152, %v2154
        %v2156 = vrot.slane %v2036, 2
        %v2157 = vrot.slane %v2037, 2
        %v2158 = vsel %vm790, %v2156, %v2157
        %v2159 = vrot.slane %v2038, 2
        %v2160 = vsel %vm790, %v2157, %v2159
        %v2161 = vrot.slane %v2039, 2
        %v2162 = vrot.slane %v2040, 2
        %v2163 = vsel %vm790, %v2161, %v2162
        %v2164 = vrot.slane %v2041, 2
        %v2165 = vsel %vm790, %v2162, %v2164
        %v2166 = vrot.slane %v2042, 2
        %v2167 = vrot.slane %v2043, 2
        %v2168 = vsel %vm790, %v2166, %v2167
        %v2169 = vrot.slane %v2044, 2
        %v2170 = vsel %vm790, %v2167, %v2169
        %v2171 = vrot.slane %v2045, 2
        %v2172 = vrot.slane %v2046, 2
        %v2173 = vsel %vm790, %v2171, %v2172
        %v2174 = vrot.slane %v2047, 2
        %v2175 = vsel %vm790, %v2172, %v2174
        %v2224 = vadd.f32 %v1948, %v2096
        %v2225 = vadd.f32 %v1949, %v2098
        %v2226 = vadd.f32 %v1950, %v2100
        %v2227 = vadd.f32 %v1951, %v2101
        %v2228 = vadd.f32 %v1952, %v2103
        %v2229 = vadd.f32 %v1953, %v2105
        %v2230 = vadd.f32 %v1954, %v2106
        %v2231 = vadd.f32 %v1955, %v2108
        %v2232 = vadd.f32 %v1956, %v2110
        %v2233 = vadd.f32 %v1957, %v2111
        %v2234 = vadd.f32 %v1958, %v2113
        %v2235 = vadd.f32 %v1959, %v2115
        %v2236 = vadd.f32 %v1960, %v2116
        %v2237 = vadd.f32 %v1961, %v2118
        %v2238 = vadd.f32 %v1962, %v2120
        %v2239 = vadd.f32 %v1963, %v2121
        %v2240 = vadd.f32 %v1964, %v2123
        %v2241 = vadd.f32 %v1965, %v2125
        %v2242 = vadd.f32 %v1966, %v2126
        %v2243 = vadd.f32 %v1967, %v2128
        %v2244 = vadd.f32 %v1968, %v2130
        %v2245 = vadd.f32 %v1969, %v2131
        %v2246 = vadd.f32 %v1970, %v2133
        %v2247 = vadd.f32 %v1971, %v2135
        %v2248 = vadd.f32 %v1972, %v2136
        %v2249 = vadd.f32 %v1973, %v2138
        %v2250 = vadd.f32 %v1974, %v2140
        %v2251 = vadd.f32 %v1975, %v2141
        %v2252 = vadd.f32 %v1976, %v2143
        %v2253 = vadd.f32 %v1977, %v2145
        %v2254 = vadd.f32 %v1978, %v2146
        %v2255 = vadd.f32 %v1979, %v2148
        %v2256 = vadd.f32 %v1980, %v2150
        %v2257 = vadd.f32 %v1981, %v2151
        %v2258 = vadd.f32 %v1982, %v2153
        %v2259 = vadd.f32 %v1983, %v2155
        %v2260 = vadd.f32 %v1984, %v2156
        %v2261 = vadd.f32 %v1985, %v2158
        %v2262 = vadd.f32 %v1986, %v2160
        %v2263 = vadd.f32 %v1987, %v2161
        %v2264 = vadd.f32 %v1988, %v2163
        %v2265 = vadd.f32 %v1989, %v2165
        %v2266 = vadd.f32 %v1990, %v2166
        %v2267 = vadd.f32 %v1991, %v2168
        %v2268 = vadd.f32 %v1992, %v2170
        %v2269 = vadd.f32 %v1993, %v2171
        %v2270 = vadd.f32 %v1994, %v2173
        %v2271 = vadd.f32 %v1995, %v2175
        %v2272 = vmul.f32 %v2224, 0.5
        %v2273 = vmul.f32 %v2225, 0.5
        %v2274 = vmul.f32 %v2226, 0.5
        %v2275 = vmul.f32 %v2227, 0.5
        %v2276 = vmul.f32 %v2228, 0.5
        %v2277 = vmul.f32 %v2229, 0.5
        %v2278 = vmul.f32 %v2230, 0.5
        %v2279 = vmul.f32 %v2231, 0.5
        %v2280 = vmul.f32 %v2232, 0.5
        %v2281 = vmul.f32 %v2233, 0.5
        %v2282 = vmul.f32 %v2234, 0.5
        %v2283 = vmul.f32 %v2235, 0.5
        %v2284 = vmul.f32 %v2236, 0.5
        %v2285 = vmul.f32 %v2237, 0.5
        %v2286 = vmul.f32 %v2238, 0.5
        %v2287 = vmul.f32 %v2239, 0.5
        %v2288 = vmul.f32 %v2240, 0.5
        %v2289 = vmul.f32 %v2241, 0.5
        %v2290 = vmul.f32 %v2242, 0.5
        %v2291 = vmul.f32 %v2243, 0.5
        %v2292 = vmul.f32 %v2244, 0.5
        %v2293 = vmul.f32 %v2245, 0.5
        %v2294 = vmul.f32 %v2246, 0.5
        %v2295 = vmul.f32 %v2247, 0.5
        %v2296 = vmul.f32 %v2248, 0.5
        %v2297 = vmul.f32 %v2249, 0.5
        %v2298 = vmul.f32 %v2250, 0.5
        %v2299 = vmul.f32 %v2251, 0.5
        %v2300 = vmul.f32 %v2252, 0.5
        %v2301 = vmul.f32 %v2253, 0.5
        %v2302 = vmul.f32 %v2254, 0.5
        %v2303 = vmul.f32 %v2255, 0.5
        %v2304 = vmul.f32 %v2256, 0.5
        %v2305 = vmul.f32 %v2257, 0.5
        %v2306 = vmul.f32 %v2258, 0.5
        %v2307 = vmul.f32 %v2259, 0.5
        %v2308 = vmul.f32 %v2260, 0.5
        %v2309 = vmul.f32 %v2261, 0.5
        %v2310 = vmul.f32 %v2262, 0.5
        %v2311 = vmul.f32 %v2263, 0.5
        %v2312 = vmul.f32 %v2264, 0.5
        %v2313 = vmul.f32 %v2265, 0.5
        %v2314 = vmul.f32 %v2266, 0.5
        %v2315 = vmul.f32 %v2267, 0.5
        %v2316 = vmul.f32 %v2268, 0.5
        %v2317 = vmul.f32 %v2269, 0.5
        %v2318 = vmul.f32 %v2270, 0.5
        %v2319 = vmul.f32 %v2271, 0.5
        %v2320 = vmul.f32 %v2224, 0.044715
        %v2321 = vmul.f32 %v2225, 0.044715
        %v2322 = vmul.f32 %v2226, 0.044715
        %v2323 = vmul.f32 %v2227, 0.044715
        %v2324 = vmul.f32 %v2228, 0.044715
        %v2325 = vmul.f32 %v2229, 0.044715
        %v2326 = vmul.f32 %v2230, 0.044715
        %v2327 = vmul.f32 %v2231, 0.044715
        %v2328 = vmul.f32 %v2232, 0.044715
        %v2329 = vmul.f32 %v2233, 0.044715
        %v2330 = vmul.f32 %v2234, 0.044715
        %v2331 = vmul.f32 %v2235, 0.044715
        %v2332 = vmul.f32 %v2236, 0.044715
        %v2333 = vmul.f32 %v2237, 0.044715
        %v2334 = vmul.f32 %v2238, 0.044715
        %v2335 = vmul.f32 %v2239, 0.044715
        %v2336 = vmul.f32 %v2240, 0.044715
        %v2337 = vmul.f32 %v2241, 0.044715
        %v2338 = vmul.f32 %v2242, 0.044715
        %v2339 = vmul.f32 %v2243, 0.044715
        %v2340 = vmul.f32 %v2244, 0.044715
        %v2341 = vmul.f32 %v2245, 0.044715
        %v2342 = vmul.f32 %v2246, 0.044715
        %v2343 = vmul.f32 %v2247, 0.044715
        %v2344 = vmul.f32 %v2248, 0.044715
        %v2345 = vmul.f32 %v2249, 0.044715
        %v2346 = vmul.f32 %v2250, 0.044715
        %v2347 = vmul.f32 %v2251, 0.044715
        %v2348 = vmul.f32 %v2252, 0.044715
        %v2349 = vmul.f32 %v2253, 0.044715
        %v2350 = vmul.f32 %v2254, 0.044715
        %v2351 = vmul.f32 %v2255, 0.044715
        %v2352 = vmul.f32 %v2256, 0.044715
        %v2353 = vmul.f32 %v2257, 0.044715
        %v2354 = vmul.f32 %v2258, 0.044715
        %v2355 = vmul.f32 %v2259, 0.044715
        %v2356 = vmul.f32 %v2260, 0.044715
        %v2357 = vmul.f32 %v2261, 0.044715
        %v2358 = vmul.f32 %v2262, 0.044715
        %v2359 = vmul.f32 %v2263, 0.044715
        %v2360 = vmul.f32 %v2264, 0.044715
        %v2361 = vmul.f32 %v2265, 0.044715
        %v2362 = vmul.f32 %v2266, 0.044715
        %v2363 = vmul.f32 %v2267, 0.044715
        %v2364 = vmul.f32 %v2268, 0.044715
        %v2365 = vmul.f32 %v2269, 0.044715
        %v2366 = vmul.f32 %v2270, 0.044715
        %v2367 = vmul.f32 %v2271, 0.044715
        %v2368 = vmul.f32 %v2320, %v2224
        %v2369 = vmul.f32 %v2321, %v2225
        %v2370 = vmul.f32 %v2322, %v2226
        %v2371 = vmul.f32 %v2323, %v2227
        %v2372 = vmul.f32 %v2324, %v2228
        %v2373 = vmul.f32 %v2325, %v2229
        %v2374 = vmul.f32 %v2326, %v2230
        %v2375 = vmul.f32 %v2327, %v2231
        %v2376 = vmul.f32 %v2328, %v2232
        %v2377 = vmul.f32 %v2329, %v2233
        %v2378 = vmul.f32 %v2330, %v2234
        %v2379 = vmul.f32 %v2331, %v2235
        %v2380 = vmul.f32 %v2332, %v2236
        %v2381 = vmul.f32 %v2333, %v2237
        %v2382 = vmul.f32 %v2334, %v2238
        %v2383 = vmul.f32 %v2335, %v2239
        %v2384 = vmul.f32 %v2336, %v2240
        %v2385 = vmul.f32 %v2337, %v2241
        %v2386 = vmul.f32 %v2338, %v2242
        %v2387 = vmul.f32 %v2339, %v2243
        %v2388 = vmul.f32 %v2340, %v2244
        %v2389 = vmul.f32 %v2341, %v2245
        %v2390 = vmul.f32 %v2342, %v2246
        %v2391 = vmul.f32 %v2343, %v2247
        %v2392 = vmul.f32 %v2344, %v2248
        %v2393 = vmul.f32 %v2345, %v2249
        %v2394 = vmul.f32 %v2346, %v2250
        %v2395 = vmul.f32 %v2347, %v2251
        %v2396 = vmul.f32 %v2348, %v2252
        %v2397 = vmul.f32 %v2349, %v2253
        %v2398 = vmul.f32 %v2350, %v2254
        %v2399 = vmul.f32 %v2351, %v2255
        %v2400 = vmul.f32 %v2352, %v2256
        %v2401 = vmul.f32 %v2353, %v2257
        %v2402 = vmul.f32 %v2354, %v2258
        %v2403 = vmul.f32 %v2355, %v2259
        %v2404 = vmul.f32 %v2356, %v2260
        %v2405 = vmul.f32 %v2357, %v2261
        %v2406 = vmul.f32 %v2358, %v2262
        %v2407 = vmul.f32 %v2359, %v2263
        %v2408 = vmul.f32 %v2360, %v2264
        %v2409 = vmul.f32 %v2361, %v2265
        %v2410 = vmul.f32 %v2362, %v2266
        %v2411 = vmul.f32 %v2363, %v2267
        %v2412 = vmul.f32 %v2364, %v2268
        %v2413 = vmul.f32 %v2365, %v2269
        %v2414 = vmul.f32 %v2366, %v2270
        %v2415 = vmul.f32 %v2367, %v2271
        %v2416 = vmul.f32 %v2368, %v2224
        %v2417 = vmul.f32 %v2369, %v2225
        %v2418 = vmul.f32 %v2370, %v2226
        %v2419 = vmul.f32 %v2371, %v2227
        %v2420 = vmul.f32 %v2372, %v2228
        %v2421 = vmul.f32 %v2373, %v2229
        %v2422 = vmul.f32 %v2374, %v2230
        %v2423 = vmul.f32 %v2375, %v2231
        %v2424 = vmul.f32 %v2376, %v2232
        %v2425 = vmul.f32 %v2377, %v2233
        %v2426 = vmul.f32 %v2378, %v2234
        %v2427 = vmul.f32 %v2379, %v2235
        %v2428 = vmul.f32 %v2380, %v2236
        %v2429 = vmul.f32 %v2381, %v2237
        %v2430 = vmul.f32 %v2382, %v2238
        %v2431 = vmul.f32 %v2383, %v2239
        %v2432 = vmul.f32 %v2384, %v2240
        %v2433 = vmul.f32 %v2385, %v2241
        %v2434 = vmul.f32 %v2386, %v2242
        %v2435 = vmul.f32 %v2387, %v2243
        %v2436 = vmul.f32 %v2388, %v2244
        %v2437 = vmul.f32 %v2389, %v2245
        %v2438 = vmul.f32 %v2390, %v2246
        %v2439 = vmul.f32 %v2391, %v2247
        %v2440 = vmul.f32 %v2392, %v2248
        %v2441 = vmul.f32 %v2393, %v2249
        %v2442 = vmul.f32 %v2394, %v2250
        %v2443 = vmul.f32 %v2395, %v2251
        %v2444 = vmul.f32 %v2396, %v2252
        %v2445 = vmul.f32 %v2397, %v2253
        %v2446 = vmul.f32 %v2398, %v2254
        %v2447 = vmul.f32 %v2399, %v2255
        %v2448 = vmul.f32 %v2400, %v2256
        %v2449 = vmul.f32 %v2401, %v2257
        %v2450 = vmul.f32 %v2402, %v2258
        %v2451 = vmul.f32 %v2403, %v2259
        %v2452 = vmul.f32 %v2404, %v2260
        %v2453 = vmul.f32 %v2405, %v2261
        %v2454 = vmul.f32 %v2406, %v2262
        %v2455 = vmul.f32 %v2407, %v2263
        %v2456 = vmul.f32 %v2408, %v2264
        %v2457 = vmul.f32 %v2409, %v2265
        %v2458 = vmul.f32 %v2410, %v2266
        %v2459 = vmul.f32 %v2411, %v2267
        %v2460 = vmul.f32 %v2412, %v2268
        %v2461 = vmul.f32 %v2413, %v2269
        %v2462 = vmul.f32 %v2414, %v2270
        %v2463 = vmul.f32 %v2415, %v2271
        %v2464 = vadd.f32 %v2224, %v2416
        %v2465 = vadd.f32 %v2225, %v2417
        %v2466 = vadd.f32 %v2226, %v2418
        %v2467 = vadd.f32 %v2227, %v2419
        %v2468 = vadd.f32 %v2228, %v2420
        %v2469 = vadd.f32 %v2229, %v2421
        %v2470 = vadd.f32 %v2230, %v2422
        %v2471 = vadd.f32 %v2231, %v2423
        %v2472 = vadd.f32 %v2232, %v2424
        %v2473 = vadd.f32 %v2233, %v2425
        %v2474 = vadd.f32 %v2234, %v2426
        %v2475 = vadd.f32 %v2235, %v2427
        %v2476 = vadd.f32 %v2236, %v2428
        %v2477 = vadd.f32 %v2237, %v2429
        %v2478 = vadd.f32 %v2238, %v2430
        %v2479 = vadd.f32 %v2239, %v2431
        %v2480 = vadd.f32 %v2240, %v2432
        %v2481 = vadd.f32 %v2241, %v2433
        %v2482 = vadd.f32 %v2242, %v2434
        %v2483 = vadd.f32 %v2243, %v2435
        %v2484 = vadd.f32 %v2244, %v2436
        %v2485 = vadd.f32 %v2245, %v2437
        %v2486 = vadd.f32 %v2246, %v2438
        %v2487 = vadd.f32 %v2247, %v2439
        %v2488 = vadd.f32 %v2248, %v2440
        %v2489 = vadd.f32 %v2249, %v2441
        %v2490 = vadd.f32 %v2250, %v2442
        %v2491 = vadd.f32 %v2251, %v2443
        %v2492 = vadd.f32 %v2252, %v2444
        %v2493 = vadd.f32 %v2253, %v2445
        %v2494 = vadd.f32 %v2254, %v2446
        %v2495 = vadd.f32 %v2255, %v2447
        %v2496 = vadd.f32 %v2256, %v2448
        %v2497 = vadd.f32 %v2257, %v2449
        %v2498 = vadd.f32 %v2258, %v2450
        %v2499 = vadd.f32 %v2259, %v2451
        %v2500 = vadd.f32 %v2260, %v2452
        %v2501 = vadd.f32 %v2261, %v2453
        %v2502 = vadd.f32 %v2262, %v2454
        %v2503 = vadd.f32 %v2263, %v2455
        %v2504 = vadd.f32 %v2264, %v2456
        %v2505 = vadd.f32 %v2265, %v2457
        %v2506 = vadd.f32 %v2266, %v2458
        %v2507 = vadd.f32 %v2267, %v2459
        %v2508 = vadd.f32 %v2268, %v2460
        %v2509 = vadd.f32 %v2269, %v2461
        %v2510 = vadd.f32 %v2270, %v2462
        %v2511 = vadd.f32 %v2271, %v2463
        %v2512 = vmul.f32 %v2464, 0.7978846
        %v2513 = vmul.f32 %v2465, 0.7978846
        %v2514 = vmul.f32 %v2466, 0.7978846
        %v2515 = vmul.f32 %v2467, 0.7978846
        %v2516 = vmul.f32 %v2468, 0.7978846
        %v2517 = vmul.f32 %v2469, 0.7978846
        %v2518 = vmul.f32 %v2470, 0.7978846
        %v2519 = vmul.f32 %v2471, 0.7978846
        %v2520 = vmul.f32 %v2472, 0.7978846
        %v2521 = vmul.f32 %v2473, 0.7978846
        %v2522 = vmul.f32 %v2474, 0.7978846
        %v2523 = vmul.f32 %v2475, 0.7978846
        %v2524 = vmul.f32 %v2476, 0.7978846
        %v2525 = vmul.f32 %v2477, 0.7978846
        %v2526 = vmul.f32 %v2478, 0.7978846
        %v2527 = vmul.f32 %v2479, 0.7978846
        %v2528 = vmul.f32 %v2480, 0.7978846
        %v2529 = vmul.f32 %v2481, 0.7978846
        %v2530 = vmul.f32 %v2482, 0.7978846
        %v2531 = vmul.f32 %v2483, 0.7978846
        %v2532 = vmul.f32 %v2484, 0.7978846
        %v2533 = vmul.f32 %v2485, 0.7978846
        %v2534 = vmul.f32 %v2486, 0.7978846
        %v2535 = vmul.f32 %v2487, 0.7978846
        %v2536 = vmul.f32 %v2488, 0.7978846
        %v2537 = vmul.f32 %v2489, 0.7978846
        %v2538 = vmul.f32 %v2490, 0.7978846
        %v2539 = vmul.f32 %v2491, 0.7978846
        %v2540 = vmul.f32 %v2492, 0.7978846
        %v2541 = vmul.f32 %v2493, 0.7978846
        %v2542 = vmul.f32 %v2494, 0.7978846
        %v2543 = vmul.f32 %v2495, 0.7978846
        %v2544 = vmul.f32 %v2496, 0.7978846
        %v2545 = vmul.f32 %v2497, 0.7978846
        %v2546 = vmul.f32 %v2498, 0.7978846
        %v2547 = vmul.f32 %v2499, 0.7978846
        %v2548 = vmul.f32 %v2500, 0.7978846
        %v2549 = vmul.f32 %v2501, 0.7978846
        %v2550 = vmul.f32 %v2502, 0.7978846
        %v2551 = vmul.f32 %v2503, 0.7978846
        %v2552 = vmul.f32 %v2504, 0.7978846
        %v2553 = vmul.f32 %v2505, 0.7978846
        %v2554 = vmul.f32 %v2506, 0.7978846
        %v2555 = vmul.f32 %v2507, 0.7978846
        %v2556 = vmul.f32 %v2508, 0.7978846
        %v2557 = vmul.f32 %v2509, 0.7978846
        %v2558 = vmul.f32 %v2510, 0.7978846
        %v2559 = vmul.f32 %v2511, 0.7978846
        %v2560 = vtanh.pop %v2512
        %v2561 = vtanh.pop %v2513
        %v2562 = vtanh.pop %v2514
        %v2563 = vtanh.pop %v2515
        %v2564 = vtanh.pop %v2516
        %v2565 = vtanh.pop %v2517
        %v2566 = vtanh.pop %v2518
        %v2567 = vtanh.pop %v2519
        %v2568 = vtanh.pop %v2520
        %v2569 = vtanh.pop %v2521
        %v2570 = vtanh.pop %v2522
        %v2571 = vtanh.pop %v2523
        %v2572 = vtanh.pop %v2524
        %v2573 = vtanh.pop %v2525
        %v2574 = vtanh.pop %v2526
        %v2575 = vtanh.pop %v2527
        %v2576 = vtanh.pop %v2528
        %v2577 = vtanh.pop %v2529
        %v2578 = vtanh.pop %v2530
        %v2579 = vtanh.pop %v2531
        %v2580 = vtanh.pop %v2532
        %v2581 = vtanh.pop %v2533
        %v2582 = vtanh.pop %v2534
        %v2583 = vtanh.pop %v2535
        %v2584 = vtanh.pop %v2536
        %v2585 = vtanh.pop %v2537
        %v2586 = vtanh.pop %v2538
        %v2587 = vtanh.pop %v2539
        %v2588 = vtanh.pop %v2540
        %v2589 = vtanh.pop %v2541
        %v2590 = vtanh.pop %v2542
        %v2591 = vtanh.pop %v2543
        %v2592 = vtanh.pop %v2544
        %v2593 = vtanh.pop %v2545
        %v2594 = vtanh.pop %v2546
        %v2595 = vtanh.pop %v2547
        %v2596 = vtanh.pop %v2548
        %v2597 = vtanh.pop %v2549
        %v2598 = vtanh.pop %v2550
        %v2599 = vtanh.pop %v2551
        %v2600 = vtanh.pop %v2552
        %v2601 = vtanh.pop %v2553
        %v2602 = vtanh.pop %v2554
        %v2603 = vtanh.pop %v2555
        %v2604 = vtanh.pop %v2556
        %v2605 = vtanh.pop %v2557
        %v2606 = vtanh.pop %v2558
        %v2607 = vtanh.pop %v2559
        %v2608 = vadd.f32 %v2560, 1.0
        %v2609 = vadd.f32 %v2561, 1.0
        %v2610 = vadd.f32 %v2562, 1.0
        %v2611 = vadd.f32 %v2563, 1.0
        %v2612 = vadd.f32 %v2564, 1.0
        %v2613 = vadd.f32 %v2565, 1.0
        %v2614 = vadd.f32 %v2566, 1.0
        %v2615 = vadd.f32 %v2567, 1.0
        %v2616 = vadd.f32 %v2568, 1.0
        %v2617 = vadd.f32 %v2569, 1.0
        %v2618 = vadd.f32 %v2570, 1.0
        %v2619 = vadd.f32 %v2571, 1.0
        %v2620 = vadd.f32 %v2572, 1.0
        %v2621 = vadd.f32 %v2573, 1.0
        %v2622 = vadd.f32 %v2574, 1.0
        %v2623 = vadd.f32 %v2575, 1.0
        %v2624 = vadd.f32 %v2576, 1.0
        %v2625 = vadd.f32 %v2577, 1.0
        %v2626 = vadd.f32 %v2578, 1.0
        %v2627 = vadd.f32 %v2579, 1.0
        %v2628 = vadd.f32 %v2580, 1.0
        %v2629 = vadd.f32 %v2581, 1.0
        %v2630 = vadd.f32 %v2582, 1.0
        %v2631 = vadd.f32 %v2583, 1.0
        %v2632 = vadd.f32 %v2584, 1.0
        %v2633 = vadd.f32 %v2585, 1.0
        %v2634 = vadd.f32 %v2586, 1.0
        %v2635 = vadd.f32 %v2587, 1.0
        %v2636 = vadd.f32 %v2588, 1.0
        %v2637 = vadd.f32 %v2589, 1.0
        %v2638 = vadd.f32 %v2590, 1.0
        %v2639 = vadd.f32 %v2591, 1.0
        %v2640 = vadd.f32 %v2592, 1.0
        %v2641 = vadd.f32 %v2593, 1.0
        %v2642 = vadd.f32 %v2594, 1.0
        %v2643 = vadd.f32 %v2595, 1.0
        %v2644 = vadd.f32 %v2596, 1.0
        %v2645 = vadd.f32 %v2597, 1.0
        %v2646 = vadd.f32 %v2598, 1.0
        %v2647 = vadd.f32 %v2599, 1.0
        %v2648 = vadd.f32 %v2600, 1.0
        %v2649 = vadd.f32 %v2601, 1.0
        %v2650 = vadd.f32 %v2602, 1.0
        %v2651 = vadd.f32 %v2603, 1.0
        %v2652 = vadd.f32 %v2604, 1.0
        %v2653 = vadd.f32 %v2605, 1.0
        %v2654 = vadd.f32 %v2606, 1.0
        %v2655 = vadd.f32 %v2607, 1.0
        %v2656 = vmul.f32 %v2272, %v2608
        %v2657 = vmul.f32 %v2273, %v2609
        %v2658 = vmul.f32 %v2274, %v2610
        %v2659 = vmul.f32 %v2275, %v2611
        %v2660 = vmul.f32 %v2276, %v2612
        %v2661 = vmul.f32 %v2277, %v2613
        %v2662 = vmul.f32 %v2278, %v2614
        %v2663 = vmul.f32 %v2279, %v2615
        %v2664 = vmul.f32 %v2280, %v2616
        %v2665 = vmul.f32 %v2281, %v2617
        %v2666 = vmul.f32 %v2282, %v2618
        %v2667 = vmul.f32 %v2283, %v2619
        %v2668 = vmul.f32 %v2284, %v2620
        %v2669 = vmul.f32 %v2285, %v2621
        %v2670 = vmul.f32 %v2286, %v2622
        %v2671 = vmul.f32 %v2287, %v2623
        %v2672 = vmul.f32 %v2288, %v2624
        %v2673 = vmul.f32 %v2289, %v2625
        %v2674 = vmul.f32 %v2290, %v2626
        %v2675 = vmul.f32 %v2291, %v2627
        %v2676 = vmul.f32 %v2292, %v2628
        %v2677 = vmul.f32 %v2293, %v2629
        %v2678 = vmul.f32 %v2294, %v2630
        %v2679 = vmul.f32 %v2295, %v2631
        %v2680 = vmul.f32 %v2296, %v2632
        %v2681 = vmul.f32 %v2297, %v2633
        %v2682 = vmul.f32 %v2298, %v2634
        %v2683 = vmul.f32 %v2299, %v2635
        %v2684 = vmul.f32 %v2300, %v2636
        %v2685 = vmul.f32 %v2301, %v2637
        %v2686 = vmul.f32 %v2302, %v2638
        %v2687 = vmul.f32 %v2303, %v2639
        %v2688 = vmul.f32 %v2304, %v2640
        %v2689 = vmul.f32 %v2305, %v2641
        %v2690 = vmul.f32 %v2306, %v2642
        %v2691 = vmul.f32 %v2307, %v2643
        %v2692 = vmul.f32 %v2308, %v2644
        %v2693 = vmul.f32 %v2309, %v2645
        %v2694 = vmul.f32 %v2310, %v2646
        %v2695 = vmul.f32 %v2311, %v2647
        %v2696 = vmul.f32 %v2312, %v2648
        %v2697 = vmul.f32 %v2313, %v2649
        %v2698 = vmul.f32 %v2314, %v2650
        %v2699 = vmul.f32 %v2315, %v2651
        %v2700 = vmul.f32 %v2316, %v2652
        %v2701 = vmul.f32 %v2317, %v2653
        %v2702 = vmul.f32 %v2318, %v2654
        %v2703 = vmul.f32 %v2319, %v2655
        %v2704 = vlaneseq
        %v2705 = vshrl.u32 %v2704, 7
        %v2706 = vsub.s32 2, %v2705
        %v2707 = vrot.slane %v202, %v2706
        %v2708 = vmul.f32 %v2656, %v2707
        %v2709 = vmul.f32 %v2657, %v2707
        %v2710 = vmul.f32 %v2658, %v2707
        %v2711 = vmul.f32 %v2659, %v2707
        %v2712 = vmul.f32 %v2660, %v2707
        %v2713 = vmul.f32 %v2661, %v2707
        %v2714 = vmul.f32 %v2662, %v2707
        %v2715 = vmul.f32 %v2663, %v2707
        %v2716 = vmul.f32 %v2664, %v2707
        %v2717 = vmul.f32 %v2665, %v2707
        %v2718 = vmul.f32 %v2666, %v2707
        %v2719 = vmul.f32 %v2667, %v2707
        %v2720 = vmul.f32 %v2668, %v2707
        %v2721 = vmul.f32 %v2669, %v2707
        %v2722 = vmul.f32 %v2670, %v2707
        %v2723 = vmul.f32 %v2671, %v2707
        %v2724 = vmul.f32 %v2672, %v2707
        %v2725 = vmul.f32 %v2673, %v2707
        %v2726 = vmul.f32 %v2674, %v2707
        %v2727 = vmul.f32 %v2675, %v2707
        %v2728 = vmul.f32 %v2676, %v2707
        %v2729 = vmul.f32 %v2677, %v2707
        %v2730 = vmul.f32 %v2678, %v2707
        %v2731 = vmul.f32 %v2679, %v2707
        %v2732 = vmul.f32 %v2680, %v2707
        %v2733 = vmul.f32 %v2681, %v2707
        %v2734 = vmul.f32 %v2682, %v2707
        %v2735 = vmul.f32 %v2683, %v2707
        %v2736 = vmul.f32 %v2684, %v2707
        %v2737 = vmul.f32 %v2685, %v2707
        %v2738 = vmul.f32 %v2686, %v2707
        %v2739 = vmul.f32 %v2687, %v2707
        %v2740 = vmul.f32 %v2688, %v2707
        %v2741 = vmul.f32 %v2689, %v2707
        %v2742 = vmul.f32 %v2690, %v2707
        %v2743 = vmul.f32 %v2691, %v2707
        %v2744 = vmul.f32 %v2692, %v2707
        %v2745 = vmul.f32 %v2693, %v2707
        %v2746 = vmul.f32 %v2694, %v2707
        %v2747 = vmul.f32 %v2695, %v2707
        %v2748 = vmul.f32 %v2696, %v2707
        %v2749 = vmul.f32 %v2697, %v2707
        %v2750 = vmul.f32 %v2698, %v2707
        %v2751 = vmul.f32 %v2699, %v2707
        %v2752 = vmul.f32 %v2700, %v2707
        %v2753 = vmul.f32 %v2701, %v2707
        %v2754 = vmul.f32 %v2702, %v2707
        %v2755 = vmul.f32 %v2703, %v2707
        %v2756 = vlaneseq
        %v2757 = vshrl.u32 %v2756, 7
        %v2758 = vsub.s32 3, %v2757
        %v2759 = vrot.slane %v202, %v2758
        %v2760 = vadd.f32 %v2708, %v2759
        %v2761 = vadd.f32 %v2709, %v2759
        %v2762 = vadd.f32 %v2710, %v2759
        %v2763 = vadd.f32 %v2711, %v2759
        %v2764 = vadd.f32 %v2712, %v2759
        %v2765 = vadd.f32 %v2713, %v2759
        %v2766 = vadd.f32 %v2714, %v2759
        %v2767 = vadd.f32 %v2715, %v2759
        %v2768 = vadd.f32 %v2716, %v2759
        %v2769 = vadd.f32 %v2717, %v2759
        %v2770 = vadd.f32 %v2718, %v2759
        %v2771 = vadd.f32 %v2719, %v2759
        %v2772 = vadd.f32 %v2720, %v2759
        %v2773 = vadd.f32 %v2721, %v2759
        %v2774 = vadd.f32 %v2722, %v2759
        %v2775 = vadd.f32 %v2723, %v2759
        %v2776 = vadd.f32 %v2724, %v2759
        %v2777 = vadd.f32 %v2725, %v2759
        %v2778 = vadd.f32 %v2726, %v2759
        %v2779 = vadd.f32 %v2727, %v2759
        %v2780 = vadd.f32 %v2728, %v2759
        %v2781 = vadd.f32 %v2729, %v2759
        %v2782 = vadd.f32 %v2730, %v2759
        %v2783 = vadd.f32 %v2731, %v2759
        %v2784 = vadd.f32 %v2732, %v2759
        %v2785 = vadd.f32 %v2733, %v2759
        %v2786 = vadd.f32 %v2734, %v2759
        %v2787 = vadd.f32 %v2735, %v2759
        %v2788 = vadd.f32 %v2736, %v2759
        %v2789 = vadd.f32 %v2737, %v2759
        %v2790 = vadd.f32 %v2738, %v2759
        %v2791 = vadd.f32 %v2739, %v2759
        %v2792 = vadd.f32 %v2740, %v2759
        %v2793 = vadd.f32 %v2741, %v2759
        %v2794 = vadd.f32 %v2742, %v2759
        %v2795 = vadd.f32 %v2743, %v2759
        %v2796 = vadd.f32 %v2744, %v2759
        %v2797 = vadd.f32 %v2745, %v2759
        %v2798 = vadd.f32 %v2746, %v2759
        %v2799 = vadd.f32 %v2747, %v2759
        %v2800 = vadd.f32 %v2748, %v2759
        %v2801 = vadd.f32 %v2749, %v2759
        %v2802 = vadd.f32 %v2750, %v2759
        %v2803 = vadd.f32 %v2751, %v2759
        %v2804 = vadd.f32 %v2752, %v2759
        %v2805 = vadd.f32 %v2753, %v2759
        %v2806 = vadd.f32 %v2754, %v2759
        %v2807 = vadd.f32 %v2755, %v2759
        %v2840 = vrot.slane %v968, 1
        %v2841 = vrot.slane %v969, 1
        %v2842 = vsel %vm545, %v2840, %v2841
        %v2843 = vrot.slane %v972, 1
        %v2844 = vrot.slane %v973, 1
        %v2845 = vsel %vm545, %v2843, %v2844
        %v2846 = vrot.slane %v976, 1
        %v2847 = vrot.slane %v977, 1
        %v2848 = vsel %vm545, %v2846, %v2847
        %v2849 = vrot.slane %v980, 1
        %v2850 = vrot.slane %v981, 1
        %v2851 = vsel %vm545, %v2849, %v2850
        %v2852 = vrot.slane %v984, 1
        %v2853 = vrot.slane %v985, 1
        %v2854 = vsel %vm545, %v2852, %v2853
        %v2855 = vrot.slane %v988, 1
        %v2856 = vrot.slane %v989, 1
        %v2857 = vsel %vm545, %v2855, %v2856
        %v2858 = vrot.slane %v992, 1
        %v2859 = vrot.slane %v993, 1
        %v2860 = vsel %vm545, %v2858, %v2859
        %v2861 = vrot.slane %v996, 1
        %v2862 = vrot.slane %v997, 1
        %v2863 = vsel %vm545, %v2861, %v2862
        %v2864 = vrot.slane %v1000, 1
        %v2865 = vrot.slane %v1001, 1
        %v2866 = vsel %vm545, %v2864, %v2865
        %v2867 = vrot.slane %v1004, 1
        %v2868 = vrot.slane %v1005, 1
        %v2869 = vsel %vm545, %v2867, %v2868
        %v2870 = vrot.slane %v1008, 1
        %v2871 = vrot.slane %v1009, 1
        %v2872 = vsel %vm545, %v2870, %v2871
        %v2873 = vrot.slane %v1012, 1
        %v2874 = vrot.slane %v1013, 1
        %v2875 = vsel %vm545, %v2873, %v2874
        %v2876 = vrot.slane %v1016, 1
        %v2877 = vrot.slane %v1017, 1
        %v2878 = vsel %vm545, %v2876, %v2877
        %v2879 = vrot.slane %v1020, 1
        %v2880 = vrot.slane %v1021, 1
        %v2881 = vsel %vm545, %v2879, %v2880
        %v2882 = vrot.slane %v1024, 1
        %v2883 = vrot.slane %v1025, 1
        %v2884 = vsel %vm545, %v2882, %v2883
        %v2885 = vrot.slane %v1028, 1
        %v2886 = vrot.slane %v1029, 1
        %v2887 = vsel %vm545, %v2885, %v2886
        %v2936 = vadd.f32 %v2760, %v2840
        %v2937 = vadd.f32 %v2761, %v2842
        %v2938 = vadd.f32 %v2762, %v2841
        %v2939 = vadd.f32 %v2763, %v2843
        %v2940 = vadd.f32 %v2764, %v2845
        %v2941 = vadd.f32 %v2765, %v2844
        %v2942 = vadd.f32 %v2766, %v2846
        %v2943 = vadd.f32 %v2767, %v2848
        %v2944 = vadd.f32 %v2768, %v2847
        %v2945 = vadd.f32 %v2769, %v2849
        %v2946 = vadd.f32 %v2770, %v2851
        %v2947 = vadd.f32 %v2771, %v2850
        %v2948 = vadd.f32 %v2772, %v2852
        %v2949 = vadd.f32 %v2773, %v2854
        %v2950 = vadd.f32 %v2774, %v2853
        %v2951 = vadd.f32 %v2775, %v2855
        %v2952 = vadd.f32 %v2776, %v2857
        %v2953 = vadd.f32 %v2777, %v2856
        %v2954 = vadd.f32 %v2778, %v2858
        %v2955 = vadd.f32 %v2779, %v2860
        %v2956 = vadd.f32 %v2780, %v2859
        %v2957 = vadd.f32 %v2781, %v2861
        %v2958 = vadd.f32 %v2782, %v2863
        %v2959 = vadd.f32 %v2783, %v2862
        %v2960 = vadd.f32 %v2784, %v2864
        %v2961 = vadd.f32 %v2785, %v2866
        %v2962 = vadd.f32 %v2786, %v2865
        %v2963 = vadd.f32 %v2787, %v2867
        %v2964 = vadd.f32 %v2788, %v2869
        %v2965 = vadd.f32 %v2789, %v2868
        %v2966 = vadd.f32 %v2790, %v2870
        %v2967 = vadd.f32 %v2791, %v2872
        %v2968 = vadd.f32 %v2792, %v2871
        %v2969 = vadd.f32 %v2793, %v2873
        %v2970 = vadd.f32 %v2794, %v2875
        %v2971 = vadd.f32 %v2795, %v2874
        %v2972 = vadd.f32 %v2796, %v2876
        %v2973 = vadd.f32 %v2797, %v2878
        %v2974 = vadd.f32 %v2798, %v2877
        %v2975 = vadd.f32 %v2799, %v2879
        %v2976 = vadd.f32 %v2800, %v2881
        %v2977 = vadd.f32 %v2801, %v2880
        %v2978 = vadd.f32 %v2802, %v2882
        %v2979 = vadd.f32 %v2803, %v2884
        %v2980 = vadd.f32 %v2804, %v2883
        %v2981 = vadd.f32 %v2805, %v2885
        %v2982 = vadd.f32 %v2806, %v2887
        %v2983 = vadd.f32 %v2807, %v2886
        %2984 = vst [vmem:[%s200 - $0x7] sm:$0x80] %v2936
        %2985 = vst [vmem:[%s200 + $0x1] sm:$0xff] %v2937
        %2986 = vst [vmem:[%s200 + $0x9] sm:$0x7f] %v2938
        %2987 = vst [vmem:[%s200 + $0x9] sm:$0x80] %v2939
        %2988 = vst [vmem:[%s200 + $0x11] sm:$0xff] %v2940
        %2989 = vst [vmem:[%s200 + $0x19] sm:$0x7f] %v2941
        %2990 = vst [vmem:[%s200 + $0x19] sm:$0x80] %v2942
        %2991 = vst [vmem:[%s200 + $0x21] sm:$0xff] %v2943
        %2992 = vst [vmem:[%s200 + $0x29] sm:$0x7f] %v2944
        %2993 = vst [vmem:[%s200 + $0x29] sm:$0x80] %v2945
        %2994 = vst [vmem:[%s200 + $0x31] sm:$0xff] %v2946
        %2995 = vst [vmem:[%s200 + $0x39] sm:$0x7f] %v2947
        %2996 = vst [vmem:[%s200 + $0x39] sm:$0x80] %v2948
        %2997 = vst [vmem:[%s200 + $0x41] sm:$0xff] %v2949
        %2998 = vst [vmem:[%s200 + $0x49] sm:$0x7f] %v2950
        %2999 = vst [vmem:[%s200 + $0x49] sm:$0x80] %v2951
        %3000 = vst [vmem:[%s200 + $0x51] sm:$0xff] %v2952
        %3001 = vst [vmem:[%s200 + $0x59] sm:$0x7f] %v2953
        %3002 = vst [vmem:[%s200 + $0x59] sm:$0x80] %v2954
        %3003 = vst [vmem:[%s200 + $0x61] sm:$0xff] %v2955
        %3004 = vst [vmem:[%s200 + $0x69] sm:$0x7f] %v2956
        %3005 = vst [vmem:[%s200 + $0x69] sm:$0x80] %v2957
        %3006 = vst [vmem:[%s200 + $0x71] sm:$0xff] %v2958
        %3007 = vst [vmem:[%s200 + $0x79] sm:$0x7f] %v2959
        %3008 = vst [vmem:[%s200 + $0x79] sm:$0x80] %v2960
        %3009 = vst [vmem:[%s200 + $0x81] sm:$0xff] %v2961
        %3010 = vst [vmem:[%s200 + $0x89] sm:$0x7f] %v2962
        %3011 = vst [vmem:[%s200 + $0x89] sm:$0x80] %v2963
        %3012 = vst [vmem:[%s200 + $0x91] sm:$0xff] %v2964
        %3013 = vst [vmem:[%s200 + $0x99] sm:$0x7f] %v2965
        %3014 = vst [vmem:[%s200 + $0x99] sm:$0x80] %v2966
        %3015 = vst [vmem:[%s200 + $0xa1] sm:$0xff] %v2967
        %3016 = vst [vmem:[%s200 + $0xa9] sm:$0x7f] %v2968
        %3017 = vst [vmem:[%s200 + $0xa9] sm:$0x80] %v2969
        %3018 = vst [vmem:[%s200 + $0xb1] sm:$0xff] %v2970
        %3019 = vst [vmem:[%s200 + $0xb9] sm:$0x7f] %v2971
        %3020 = vst [vmem:[%s200 + $0xb9] sm:$0x80] %v2972
        %3021 = vst [vmem:[%s200 + $0xc1] sm:$0xff] %v2973
        %3022 = vst [vmem:[%s200 + $0xc9] sm:$0x7f] %v2974
        %3023 = vst [vmem:[%s200 + $0xc9] sm:$0x80] %v2975
        %3024 = vst [vmem:[%s200 + $0xd1] sm:$0xff] %v2976
        %3025 = vst [vmem:[%s200 + $0xd9] sm:$0x7f] %v2977
        %3026 = vst [vmem:[%s200 + $0xd9] sm:$0x80] %v2978
        %3027 = vst [vmem:[%s200 + $0xe1] sm:$0xff] %v2979
        %3028 = vst [vmem:[%s200 + $0xe9] sm:$0x7f] %v2980
        %3029 = vst [vmem:[%s200 + $0xe9] sm:$0x80] %v2981
        %3030 = vst [vmem:[%s200 + $0xf1] sm:$0xff] %v2982
        %3031 = vst [vmem:[%s200 + $0xf9] sm:$0x7f] %v2983
        %s3032 = sand.u32 %s96, 1
        %s3033 = scalar_lea.sflag [#allocation5], %s3032
        %s3034 = sand.u32 %s96, 1
        %s3035 = smul.addr %s3034, 256
        %s3036 = scalar_lea.vmem [#allocation8], %s3035
        // Predicated region
        $region37: #{tpu_custom_call.1} parent=27 // pred_check
          %p3037 = pneg %p106
        $region38: #{tpu_custom_call.1} parent=27 // pred_check_branch
          %3039 = sbr.rel (%p3037) target = $region40
        $region39: #{tpu_custom_call.1} parent=27 // pred_region
          %s3041 = ssub.s32 4096, 4096
          %3042 = vsyncadd %s3033, %s3041
          %s3043 = smul.addr %s24, 32
          %s3044 = sadd.s32 %s25, %s3043
          %s3045 = smul.addr %s3044, 128
          %s3046 = scalar_lea.hbm %s2, %s3045
          %s3047 = sshll.u32 %s3036, 4
          %s3048 = int_to_ptr.vmem [resolvable:$true] %s3047
          %3053 = dma.vmem_to_hbm [thread:$0]  %s3048, 4096, %s3046, %s3033, 128, 128, 8
        $region40: #{tpu_custom_call.1} parent=27 // pred_fallthru
          _
      $region28: #{tpu_custom_call.1} parent=5 // pred_fallthru
        _
      %p3054 = scmp.le.s32.totalorder 2, %s15
      // Predicated region
      $region41: #{tpu_custom_call.1} parent=5 // pred_check
        %p3055 = pneg %p3054
      $region42: #{tpu_custom_call.1} parent=5 // pred_check_branch
        %3057 = sbr.rel (%p3055) target = $region44
      $region43: #{tpu_custom_call.1} parent=5 // pred_region
        %s3058 = ssub.s32 %s15, 2
        // Predicated region
        $region45: #{tpu_custom_call.1} parent=43 // pred_check
          %p3059 = pneg %p112
        $region46: #{tpu_custom_call.1} parent=43 // pred_check_branch
          %3061 = sbr.rel (%p3059) target = $region48
        $region47: #{tpu_custom_call.1} parent=43 // pred_region
          %s3062 = sand.u32 %s97, 1
          %s3063 = scalar_lea.sflag [#allocation5], %s3062
          %s3064 = sand.u32 %s97, 1
          %s3065 = smul.addr %s3064, 256
          %s3066 = scalar_lea.vmem [#allocation8], %s3065
          %3067 = dma.done %s3063, 4096
        $region48: #{tpu_custom_call.1} parent=43 // pred_fallthru
          _
      $region44: #{tpu_custom_call.1} parent=5 // pred_fallthru
        _
    $region6: #{tpu_custom_call.1} parent=1 // loop_footer
      %s19 = sadd.s32 1, %s15
    $region7: #{tpu_custom_call.1} parent=1 // loop_footer_branch
      %14 = sbr.rel target = $region3
    $region8: #{tpu_custom_call.1} parent=1 // loop_exit
      _
    %3068 = vsyncpa [#allocation4], 1
    %s3069 = scalar_lea.sflag [#allocation4], 1
    %3070 = vsyncpa %s3069, 1
    %3071 = vsyncpa [#allocation7], 1
    %3072 = vsyncpa [#allocation5], 1
    %s3073 = scalar_lea.sflag [#allocation5], 1
    %3074 = vsyncpa %s3073, 1

</llo_original>
